<compile_context>
chip_gen: v7x
topology: tpu7x:2x2x1
jax: 0.10.0
libtpu: 0.0.40
codegen_flags: <defaults>
</compile_context>

<pallas_src>
import numpy as np
import jax
import jax.numpy as jnp
from jax.experimental import pallas as pl
from jax.experimental.pallas import tpu as pltpu  # noqa: F401

# ---------------- model config (tiny ViT consistent with the module) ----------------
B = 2                       # batch
C = 4                       # input channels
IMG = 16                    # spatial size
P = 8                       # patch size
NP_ = (IMG // P) ** 2       # num patches = 4
N = NP_ + 1                 # tokens incl. cls = 5
N_PAD = 8                   # tokens padded to a sublane multiple
BN = B * N_PAD              # 16: whole batch flattened into one token matrix
D = 32                      # embed dim
HEADS = 4
HD = D // HEADS             # head dim = 8
MLP = 4 * D                 # mlp hidden = 128
NUM_CLASSES = 10
CLS_PAD = 128               # lane-dense head output, sliced back in the wrapper
DEPTH = 2
EPS = 1e-6
SCALE = 1.0 / (HD ** 0.5)
CPP = C * P * P             # patch vector length = 256
HB = HEADS * BN             # 64: (head, token) super-batch rows

# ------------------------- packed-parameter slab layout -------------------------
# w32 slab (bf16, [W32_ROWS, D]): patch_w, then per block [wq*SCALE, wk, wv, wproj, w2]
W32_PATCH = 0
W32_BLK = CPP
W32_BLK_ROWS = 4 * D + MLP                      # 256 rows per block
W32_ROWS = CPP + DEPTH * W32_BLK_ROWS           # 768
OFF_WQ, OFF_WK, OFF_WV, OFF_WP, OFF_W2 = 0, D, 2 * D, 3 * D, 4 * D

# w128 slab (bf16, [W128_ROWS, 128]): per block w1, then head_w (lane-padded to 128)
W128_HEAD = DEPTH * D                           # 64
W128_ROWS = DEPTH * D + D                       # 96

# vecs slab (f32, [V_ROWS, 128]); 32-wide entries occupy cols 0:D
V_BLK_ROWS = 10
# per block rows: 0 ln1_g, 1 ln1_b, 2 bq*SCALE, 3 bk, 4 bv, 5 bproj,
#                 6 ln2_g, 7 ln2_b, 8 b1 (128-wide), 9 b2
V_NORM_G = DEPTH * V_BLK_ROWS                   # 20
V_NORM_B = V_NORM_G + 1                         # 21
V_HEAD_B = V_NORM_G + 2                         # 22 (128-wide)
V_ROWS = V_NORM_G + 3                           # 23


def _vrow(d, i):
    return d * V_BLK_ROWS + i


# ------------------------- static host-side masks (numpy) -------------------------
def _build_attn_bias():
    nq = np.arange(BN)[:, None]
    nk = np.arange(BN)[None, :]
    valid = (nq // N_PAD == nk // N_PAD) & ((nk % N_PAD) < N)
    bias = np.where(valid, 0.0, -1e30).astype(np.float32)      # [BN, BN]
    return np.tile(bias, (HEADS, 1))                            # [HB, BN]


def _build_head_mask():
    r = np.arange(HB)[:, None] // BN                            # head index per row
    d = np.arange(D)[None, :] // HD                             # head index per column
    return (r == d).astype(np.float32)                          # [HB, D]


ATTN_BIAS_NP = _build_attn_bias()
HEAD_MASK_NP = _build_head_mask()


# ---------------------------- in-kernel helpers ----------------------------
def _layernorm(h, g, b):
    mu = jnp.mean(h, axis=-1, keepdims=True)
    xc = h - mu
    var = jnp.mean(xc * xc, axis=-1, keepdims=True)
    return xc * jax.lax.rsqrt(var + EPS) * g + b


def _erf(x):
    # Abramowitz & Stegun 7.1.26 (|err| < 1.5e-7): VPU mul/add + one EUP exp.
    a1, a2, a3, a4, a5 = 0.254829592, -0.284496736, 1.421413741, -1.453152027, 1.061405429
    p = 0.3275911
    sgn = jnp.where(x >= 0.0, 1.0, -1.0)
    ax = jnp.abs(x)
    t = 1.0 / (1.0 + p * ax)
    poly = ((((a5 * t + a4) * t + a3) * t + a2) * t + a1) * t
    return sgn * (1.0 - poly * jnp.exp(-ax * ax))


def _gelu_exact(x):
    return 0.5 * x * (1.0 + _erf(x * 0.7071067811865476))


# ---------------------------- fused forward kernel ----------------------------
def vit_kernel(patches_ref, tok_add_ref, bias_ref, hmask_ref,
               w32_ref, w128_ref, vecs_ref, o_ref):
    f32 = jnp.float32
    bf16 = jnp.bfloat16

    hmask = hmask_ref[...]                                      # [HB, D]  f32 0/1
    attn_bias = bias_ref[...]                                   # [HB, BN] f32

    # ---- patch embed GEMM (+ precomputed cls/pos/patch-bias additive matrix) ----
    x = jnp.dot(patches_ref[...], w32_ref[W32_PATCH:W32_PATCH + CPP, :],
                preferred_element_type=f32) + tok_add_ref[...]  # [BN, D] f32

    # ---- transformer blocks (static unroll; all params VMEM-resident) ----
    for d in range(DEPTH):
        base = W32_BLK + d * W32_BLK_ROWS
        wq = w32_ref[base + OFF_WQ:base + OFF_WQ + D, :]        # pre-scaled by 1/sqrt(HD)
        wk = w32_ref[base + OFF_WK:base + OFF_WK + D, :]
        wv = w32_ref[base + OFF_WV:base + OFF_WV + D, :]
        wp = w32_ref[base + OFF_WP:base + OFF_WP + D, :]
        w2 = w32_ref[base + OFF_W2:base + OFF_W2 + MLP, :]
        w1 = w128_ref[d * D:(d + 1) * D, :]

        g1 = vecs_ref[_vrow(d, 0):_vrow(d, 0) + 1, :D]
        b1 = vecs_ref[_vrow(d, 1):_vrow(d, 1) + 1, :D]
        bq = vecs_ref[_vrow(d, 2):_vrow(d, 2) + 1, :D]
        bk = vecs_ref[_vrow(d, 3):_vrow(d, 3) + 1, :D]
        bv = vecs_ref[_vrow(d, 4):_vrow(d, 4) + 1, :D]
        bp = vecs_ref[_vrow(d, 5):_vrow(d, 5) + 1, :D]
        g2 = vecs_ref[_vrow(d, 6):_vrow(d, 6) + 1, :D]
        b2 = vecs_ref[_vrow(d, 7):_vrow(d, 7) + 1, :D]
        bm1 = vecs_ref[_vrow(d, 8):_vrow(d, 8) + 1, :]          # [1, 128]
        bm2 = vecs_ref[_vrow(d, 9):_vrow(d, 9) + 1, :D]

        # -- attention --
        h = _layernorm(x, g1, b1)
        h_bf = h.astype(bf16)
        q = jnp.dot(h_bf, wq, preferred_element_type=f32) + bq  # [BN, D] (scale folded in)
        k = jnp.dot(h_bf, wk, preferred_element_type=f32) + bk
        v = jnp.dot(h_bf, wv, preferred_element_type=f32) + bv

        # heads folded onto sublanes: row h*BN+n holds q[n] masked to head h's lanes,
        # so ONE score matmul covers all heads & batches (bias = block-diag + key pad).
        q_bd = (jnp.concatenate([q] * HEADS, axis=0) * hmask).astype(bf16)   # [HB, D]
        # k is transposed exactly once per block inside this single fused contraction.
        s = jax.lax.dot_general(q_bd, k.astype(bf16),
                                dimension_numbers=(((1,), (1,)), ((), ())),
                                preferred_element_type=f32) + attn_bias       # [HB, BN]

        m = jnp.max(s, axis=-1, keepdims=True)
        e = jnp.exp(s - m)
        p = e * pl.reciprocal(jnp.sum(e, axis=-1, keepdims=True), approx=True)

        oa = jnp.dot(p.astype(bf16), v.astype(bf16),
                     preferred_element_type=f32) * hmask                      # [HB, D]
        attn = oa[0:BN]                                                       # head select =
        for hh in range(1, HEADS):                                            # mask + add (VPU)
            attn = attn + oa[hh * BN:(hh + 1) * BN]
        x = x + jnp.dot(attn.astype(bf16), wp, preferred_element_type=f32) + bp

        # -- MLP --
        h2 = _layernorm(x, g2, b2)
        mlp = jnp.dot(h2.astype(bf16), w1, preferred_element_type=f32) + bm1  # [BN, MLP]
        mlp = _gelu_exact(mlp)
        x = x + jnp.dot(mlp.astype(bf16), w2, preferred_element_type=f32) + bm2

    # ---- final LN + head on ALL rows (lane-dense unmasked store); padded rows are
    #      finite junk (var=0 -> beta) and are discarded in the wrapper ----
    hf = _layernorm(x, vecs_ref[V_NORM_G:V_NORM_G + 1, :D],
                    vecs_ref[V_NORM_B:V_NORM_B + 1, :D])
    o_ref[...] = jnp.dot(hf.astype(jnp.bfloat16), w128_ref[W128_HEAD:W128_HEAD + D, :],
                         preferred_element_type=f32) + vecs_ref[V_HEAD_B:V_HEAD_B + 1, :]


# ---------------------------- wrappers ----------------------------
def vit_pallas(patches_bf, params):
    out = pl.pallas_call(
        vit_kernel,
        out_shape=jax.ShapeDtypeStruct((BN, CLS_PAD), jnp.float32),
        # No grid: single step, everything (weights + activations << VMEM) resident.
    )(patches_bf,
      params["tok_add"],
      jnp.asarray(ATTN_BIAS_NP),
      jnp.asarray(HEAD_MASK_NP),
      params["w32"], params["w128"], params["vecs"])
    return out


@jax.jit
def vit_forward(x, params):
    # x: NCHW [B, C, IMG, IMG]; patchify with (c, ph, pw)-major flattening to match
    # nn.Conv2d weight layout [D, C, P, P]; pad to the kernel's [BN, CPP] token layout
    # (cls row and pad rows are zero — their embeddings come from tok_add).
    gh = IMG // P
    p = x.reshape(B, C, gh, P, gh, P)
    p = jnp.transpose(p, (0, 2, 4, 1, 3, 5)).reshape(B, NP_, CPP)
    pad = jnp.zeros((B, N_PAD, CPP), jnp.float32).at[:, 1:N, :].set(p)
    patches_bf = pad.reshape(BN, CPP).astype(jnp.bfloat16)
    logits_all = vit_pallas(patches_bf, params)                 # [BN, CLS_PAD]
    return logits_all[0::N_PAD, :NUM_CLASSES]                   # cls rows -> [B, 10]


def init_params(key):
    ks = jax.random.split(key, 24)
    ki = iter(ks)
    w = lambda shape: (0.02 * jax.random.normal(next(ki), shape)).astype(jnp.float32)
    zeros = lambda shape: jnp.zeros(shape, jnp.float32)
    ones = lambda shape: jnp.ones(shape, jnp.float32)

    patch_w = w((CPP, D))
    patch_b = zeros((D,))
    cls_token = w((1, D))
    pos_embed = w((N, D))
    blocks = []
    for _ in range(DEPTH):
        blocks.append(dict(
            ln1_g=ones((D,)), ln1_b=zeros((D,)),
            wq=w((D, D)), bq=zeros((D,)),
            wk=w((D, D)), bk=zeros((D,)),
            wv=w((D, D)), bv=zeros((D,)),
            wp=w((D, D)), bp=zeros((D,)),
            ln2_g=ones((D,)), ln2_b=zeros((D,)),
            w1=w((D, MLP)), b1=zeros((MLP,)),
            w2=w((MLP, D)), b2=zeros((D,)),
        ))
    norm_g, norm_b = ones((D,)), zeros((D,))
    head_w, head_b = w((D, NUM_CLASSES)), zeros((NUM_CLASSES,))

    # ---- pack matmul weights into two bf16 slabs (few DMAs, aligned static slices) ----
    w32_rows = [patch_w]
    for blk in blocks:
        w32_rows += [blk["wq"] * SCALE, blk["wk"], blk["wv"], blk["wp"], blk["w2"]]
    w32 = jnp.concatenate(w32_rows, axis=0).astype(jnp.bfloat16)            # [768, 32]
    assert w32.shape == (W32_ROWS, D)

    head_w_pad = jnp.zeros((D, CLS_PAD), jnp.float32).at[:, :NUM_CLASSES].set(head_w)
    w128 = jnp.concatenate([blk["w1"] for blk in blocks] + [head_w_pad],
                           axis=0).astype(jnp.bfloat16)                     # [96, 128]
    assert w128.shape == (W128_ROWS, CLS_PAD)

    # ---- pack all biases / LN params into one f32 slab [V_ROWS, 128] ----
    def row32(v):
        return jnp.zeros((1, CLS_PAD), jnp.float32).at[0, :D].set(v)

    def row128(v):
        return v.reshape(1, CLS_PAD).astype(jnp.float32)

    vrows = []
    for blk in blocks:
        vrows += [row32(blk["ln1_g"]), row32(blk["ln1_b"]),
                  row32(blk["bq"] * SCALE), row32(blk["bk"]), row32(blk["bv"]),
                  row32(blk["bp"]), row32(blk["ln2_g"]), row32(blk["ln2_b"]),
                  row128(blk["b1"]), row32(blk["b2"])]
    head_b_pad = jnp.zeros((CLS_PAD,), jnp.float32).at[:NUM_CLASSES].set(head_b)
    vrows += [row32(norm_g), row32(norm_b), row128(head_b_pad)]
    vecs = jnp.concatenate(vrows, axis=0)                                   # [23, 128]
    assert vecs.shape == (V_ROWS, CLS_PAD)

    # ---- token additive matrix: cls+pos at row 0 of each batch block, pos+patch_b at
    #      patch rows, zeros at pad rows (patch-embed bias folded in here) ----
    ta = jnp.zeros((B, N_PAD, D), jnp.float32)
    ta = ta.at[:, 0, :].set(cls_token[0] + pos_embed[0])
    ta = ta.at[:, 1:N, :].set(pos_embed[1:N] + patch_b[None, :])
    tok_add = ta.reshape(BN, D)

    return dict(w32=w32, w128=w128, vecs=vecs, tok_add=tok_add)


if __name__ == "__main__":
    key = jax.random.PRNGKey(0)
    kx, kp = jax.random.split(key)
    x = jax.random.normal(kx, (B, C, IMG, IMG), dtype=jnp.float32)  # NCHW, like PyTorch
    params = init_params(kp)
    out = vit_forward(x, params)
    jax.block_until_ready(out)
    assert out.shape == (B, NUM_CLASSES)
    print("KERNEL_OK")
</pallas_src>

<mosaic_0001>
module attributes {stable_mosaic.version = 11 : i64} {
  func.func @vit_kernel(%arg0: memref<16x256xbf16, #tpu.memory_space<vmem>>, %arg1: memref<16x32xf32, #tpu.memory_space<vmem>>, %arg2: memref<64x16xf32, #tpu.memory_space<vmem>>, %arg3: memref<64x32xf32, #tpu.memory_space<vmem>>, %arg4: memref<768x32xbf16, #tpu.memory_space<vmem>>, %arg5: memref<96x128xbf16, #tpu.memory_space<vmem>>, %arg6: memref<23x128xf32, #tpu.memory_space<vmem>>, %arg7: memref<16x128xf32, #tpu.memory_space<vmem>>) attributes {dimension_semantics = [], scalar_prefetch = 0 : i64, scratch_operands = 0 : i64, tpu.core_type = #tpu.core_type<tc>} {
    %c0 = arith.constant 0 : index
    %c0_0 = arith.constant 0 : index
    %0 = vector.load %arg3[%c0, %c0_0] : memref<64x32xf32, #tpu.memory_space<vmem>>, vector<64x32xf32>
    %c0_1 = arith.constant 0 : index
    %c0_2 = arith.constant 0 : index
    %1 = vector.load %arg2[%c0_1, %c0_2] : memref<64x16xf32, #tpu.memory_space<vmem>>, vector<64x16xf32>
    %c0_3 = arith.constant 0 : index
    %c0_4 = arith.constant 0 : index
    %2 = vector.load %arg0[%c0_3, %c0_4] : memref<16x256xbf16, #tpu.memory_space<vmem>>, vector<16x256xbf16>
    %c0_5 = arith.constant 0 : index
    %c0_6 = arith.constant 0 : index
    %3 = vector.load %arg4[%c0_5, %c0_6] : memref<768x32xbf16, #tpu.memory_space<vmem>>, vector<256x32xbf16>
    %cst = arith.constant dense<0.000000e+00> : vector<16x32xf32>
    %4 = tpu.matmul %2, %3, %cst {dimension_numbers = #tpu.dot_dimension_numbers<[1], [0], [0], [1], [0, 0, 1, 1], [], []>} : vector<16x256xbf16>, vector<256x32xbf16>, vector<16x32xf32> -> vector<16x32xf32>
    %c0_7 = arith.constant 0 : index
    %c0_8 = arith.constant 0 : index
    %5 = vector.load %arg1[%c0_7, %c0_8] : memref<16x32xf32, #tpu.memory_space<vmem>>, vector<16x32xf32>
    %6 = arith.addf %4, %5 : vector<16x32xf32>
    %c256 = arith.constant 256 : index
    %c0_9 = arith.constant 0 : index
    %7 = vector.load %arg4[%c256, %c0_9] : memref<768x32xbf16, #tpu.memory_space<vmem>>, vector<32x32xbf16>
    %c288 = arith.constant 288 : index
    %c0_10 = arith.constant 0 : index
    %8 = vector.load %arg4[%c288, %c0_10] : memref<768x32xbf16, #tpu.memory_space<vmem>>, vector<32x32xbf16>
    %c320 = arith.constant 320 : index
    %c0_11 = arith.constant 0 : index
    %9 = vector.load %arg4[%c320, %c0_11] : memref<768x32xbf16, #tpu.memory_space<vmem>>, vector<32x32xbf16>
    %c352 = arith.constant 352 : index
    %c0_12 = arith.constant 0 : index
    %10 = vector.load %arg4[%c352, %c0_12] : memref<768x32xbf16, #tpu.memory_space<vmem>>, vector<32x32xbf16>
    %c384 = arith.constant 384 : index
    %c0_13 = arith.constant 0 : index
    %11 = vector.load %arg4[%c384, %c0_13] : memref<768x32xbf16, #tpu.memory_space<vmem>>, vector<128x32xbf16>
    %c0_14 = arith.constant 0 : index
    %c0_15 = arith.constant 0 : index
    %12 = vector.load %arg5[%c0_14, %c0_15] : memref<96x128xbf16, #tpu.memory_space<vmem>>, vector<32x128xbf16>
    %c0_16 = arith.constant 0 : index
    %c0_17 = arith.constant 0 : index
    %13 = vector.load %arg6[%c0_16, %c0_17] : memref<23x128xf32, #tpu.memory_space<vmem>>, vector<1x32xf32>
    %c1 = arith.constant 1 : index
    %c0_18 = arith.constant 0 : index
    %14 = vector.load %arg6[%c1, %c0_18] : memref<23x128xf32, #tpu.memory_space<vmem>>, vector<1x32xf32>
    %c2 = arith.constant 2 : index
    %c0_19 = arith.constant 0 : index
    %15 = vector.load %arg6[%c2, %c0_19] : memref<23x128xf32, #tpu.memory_space<vmem>>, vector<1x32xf32>
    %c3 = arith.constant 3 : index
    %c0_20 = arith.constant 0 : index
    %16 = vector.load %arg6[%c3, %c0_20] : memref<23x128xf32, #tpu.memory_space<vmem>>, vector<1x32xf32>
    %c4 = arith.constant 4 : index
    %c0_21 = arith.constant 0 : index
    %17 = vector.load %arg6[%c4, %c0_21] : memref<23x128xf32, #tpu.memory_space<vmem>>, vector<1x32xf32>
    %c5 = arith.constant 5 : index
    %c0_22 = arith.constant 0 : index
    %18 = vector.load %arg6[%c5, %c0_22] : memref<23x128xf32, #tpu.memory_space<vmem>>, vector<1x32xf32>
    %c6 = arith.constant 6 : index
    %c0_23 = arith.constant 0 : index
    %19 = vector.load %arg6[%c6, %c0_23] : memref<23x128xf32, #tpu.memory_space<vmem>>, vector<1x32xf32>
    %c7 = arith.constant 7 : index
    %c0_24 = arith.constant 0 : index
    %20 = vector.load %arg6[%c7, %c0_24] : memref<23x128xf32, #tpu.memory_space<vmem>>, vector<1x32xf32>
    %c8 = arith.constant 8 : index
    %c0_25 = arith.constant 0 : index
    %21 = vector.load %arg6[%c8, %c0_25] : memref<23x128xf32, #tpu.memory_space<vmem>>, vector<1x128xf32>
    %c9 = arith.constant 9 : index
    %c0_26 = arith.constant 0 : index
    %22 = vector.load %arg6[%c9, %c0_26] : memref<23x128xf32, #tpu.memory_space<vmem>>, vector<1x32xf32>
    %cst_27 = arith.constant dense<0.000000e+00> : vector<16xf32>
    %23 = vector.multi_reduction <add>, %6, %cst_27 [1] : vector<16x32xf32> to vector<16xf32>
    %24 = vector.shape_cast %23 : vector<16xf32> to vector<16x1xf32>
    %cst_28 = arith.constant 3.200000e+01 : f32
    %25 = vector.broadcast %cst_28 : f32 to vector<16x1xf32>
    %26 = arith.divf %24, %25 : vector<16x1xf32>
    %27 = vector.broadcast %26 : vector<16x1xf32> to vector<16x32xf32>
    %28 = arith.subf %6, %27 : vector<16x32xf32>
    %29 = arith.mulf %28, %28 : vector<16x32xf32>
    %cst_29 = arith.constant dense<0.000000e+00> : vector<16xf32>
    %30 = vector.multi_reduction <add>, %29, %cst_29 [1] : vector<16x32xf32> to vector<16xf32>
    %31 = vector.shape_cast %30 : vector<16xf32> to vector<16x1xf32>
    %cst_30 = arith.constant 3.200000e+01 : f32
    %32 = vector.broadcast %cst_30 : f32 to vector<16x1xf32>
    %33 = arith.divf %31, %32 : vector<16x1xf32>
    %cst_31 = arith.constant 9.99999997E-7 : f32
    %34 = vector.broadcast %cst_31 : f32 to vector<16x1xf32>
    %35 = arith.addf %33, %34 : vector<16x1xf32>
    %36 = math.rsqrt %35 : vector<16x1xf32>
    %37 = vector.broadcast %36 : vector<16x1xf32> to vector<16x32xf32>
    %38 = arith.mulf %28, %37 : vector<16x32xf32>
    %39 = vector.broadcast %13 : vector<1x32xf32> to vector<16x32xf32>
    %40 = arith.mulf %38, %39 : vector<16x32xf32>
    %41 = vector.broadcast %14 : vector<1x32xf32> to vector<16x32xf32>
    %42 = arith.addf %40, %41 : vector<16x32xf32>
    %43 = arith.truncf %42 : vector<16x32xf32> to vector<16x32xbf16>
    %cst_32 = arith.constant dense<0.000000e+00> : vector<16x32xf32>
    %44 = tpu.matmul %43, %7, %cst_32 {dimension_numbers = #tpu.dot_dimension_numbers<[1], [0], [0], [1], [0, 0, 1, 1], [], []>} : vector<16x32xbf16>, vector<32x32xbf16>, vector<16x32xf32> -> vector<16x32xf32>
    %45 = vector.broadcast %15 : vector<1x32xf32> to vector<16x32xf32>
    %46 = arith.addf %44, %45 : vector<16x32xf32>
    %cst_33 = arith.constant dense<0.000000e+00> : vector<16x32xf32>
    %47 = tpu.matmul %43, %8, %cst_33 {dimension_numbers = #tpu.dot_dimension_numbers<[1], [0], [0], [1], [0, 0, 1, 1], [], []>} : vector<16x32xbf16>, vector<32x32xbf16>, vector<16x32xf32> -> vector<16x32xf32>
    %48 = vector.broadcast %16 : vector<1x32xf32> to vector<16x32xf32>
    %49 = arith.addf %47, %48 : vector<16x32xf32>
    %cst_34 = arith.constant dense<0.000000e+00> : vector<16x32xf32>
    %50 = tpu.matmul %43, %9, %cst_34 {dimension_numbers = #tpu.dot_dimension_numbers<[1], [0], [0], [1], [0, 0, 1, 1], [], []>} : vector<16x32xbf16>, vector<32x32xbf16>, vector<16x32xf32> -> vector<16x32xf32>
    %51 = vector.broadcast %17 : vector<1x32xf32> to vector<16x32xf32>
    %52 = arith.addf %50, %51 : vector<16x32xf32>
    %53 = tpu.concatenate %46, %46, %46, %46 in 0 : vector<16x32xf32>, vector<16x32xf32>, vector<16x32xf32>, vector<16x32xf32> -> vector<64x32xf32>
    %54 = arith.mulf %53, %0 : vector<64x32xf32>
    %55 = arith.truncf %54 : vector<64x32xf32> to vector<64x32xbf16>
    %56 = arith.truncf %49 : vector<16x32xf32> to vector<16x32xbf16>
    %cst_35 = arith.constant dense<0.000000e+00> : vector<64x16xf32>
    %57 = tpu.matmul %55, %56, %cst_35 {dimension_numbers = #tpu.dot_dimension_numbers<[1], [1], [0], [0], [0, 0, 1, 0], [], []>} : vector<64x32xbf16>, vector<16x32xbf16>, vector<64x16xf32> -> vector<64x16xf32>
    %58 = arith.addf %57, %1 : vector<64x16xf32>
    %cst_36 = arith.constant dense<0xFF800000> : vector<64xf32>
    %59 = vector.multi_reduction <maximumf>, %58, %cst_36 [1] : vector<64x16xf32> to vector<64xf32>
    %60 = vector.shape_cast %59 : vector<64xf32> to vector<64x1xf32>
    %61 = vector.broadcast %60 : vector<64x1xf32> to vector<64x16xf32>
    %62 = arith.subf %58, %61 : vector<64x16xf32>
    %63 = math.exp %62 : vector<64x16xf32>
    %cst_37 = arith.constant dense<0.000000e+00> : vector<64xf32>
    %64 = vector.multi_reduction <add>, %63, %cst_37 [1] : vector<64x16xf32> to vector<64xf32>
    %65 = vector.shape_cast %64 : vector<64xf32> to vector<64x1xf32>
    %66 = tpu.reciprocal %65 {approx = true} : vector<64x1xf32> -> vector<64x1xf32>
    %67 = vector.broadcast %66 : vector<64x1xf32> to vector<64x16xf32>
    %68 = arith.mulf %63, %67 : vector<64x16xf32>
    %69 = arith.truncf %68 : vector<64x16xf32> to vector<64x16xbf16>
    %70 = arith.truncf %52 : vector<16x32xf32> to vector<16x32xbf16>
    %cst_38 = arith.constant dense<0.000000e+00> : vector<64x32xf32>
    %71 = tpu.matmul %69, %70, %cst_38 {dimension_numbers = #tpu.dot_dimension_numbers<[1], [0], [0], [1], [0, 0, 1, 1], [], []>} : vector<64x16xbf16>, vector<16x32xbf16>, vector<64x32xf32> -> vector<64x32xf32>
    %72 = arith.mulf %71, %0 : vector<64x32xf32>
    %73 = vector.extract_strided_slice %72 {offsets = [0, 0], sizes = [16, 32], strides = [1, 1]} : vector<64x32xf32> to vector<16x32xf32>
    %74 = vector.extract_strided_slice %72 {offsets = [16, 0], sizes = [16, 32], strides = [1, 1]} : vector<64x32xf32> to vector<16x32xf32>
    %75 = arith.addf %73, %74 : vector<16x32xf32>
    %76 = vector.extract_strided_slice %72 {offsets = [32, 0], sizes = [16, 32], strides = [1, 1]} : vector<64x32xf32> to vector<16x32xf32>
    %77 = arith.addf %75, %76 : vector<16x32xf32>
    %78 = vector.extract_strided_slice %72 {offsets = [48, 0], sizes = [16, 32], strides = [1, 1]} : vector<64x32xf32> to vector<16x32xf32>
    %79 = arith.addf %77, %78 : vector<16x32xf32>
    %80 = arith.truncf %79 : vector<16x32xf32> to vector<16x32xbf16>
    %cst_39 = arith.constant dense<0.000000e+00> : vector<16x32xf32>
    %81 = tpu.matmul %80, %10, %cst_39 {dimension_numbers = #tpu.dot_dimension_numbers<[1], [0], [0], [1], [0, 0, 1, 1], [], []>} : vector<16x32xbf16>, vector<32x32xbf16>, vector<16x32xf32> -> vector<16x32xf32>
    %82 = arith.addf %6, %81 : vector<16x32xf32>
    %83 = vector.broadcast %18 : vector<1x32xf32> to vector<16x32xf32>
    %84 = arith.addf %82, %83 : vector<16x32xf32>
    %cst_40 = arith.constant dense<0.000000e+00> : vector<16xf32>
    %85 = vector.multi_reduction <add>, %84, %cst_40 [1] : vector<16x32xf32> to vector<16xf32>
    %86 = vector.shape_cast %85 : vector<16xf32> to vector<16x1xf32>
    %cst_41 = arith.constant 3.200000e+01 : f32
    %87 = vector.broadcast %cst_41 : f32 to vector<16x1xf32>
    %88 = arith.divf %86, %87 : vector<16x1xf32>
    %89 = vector.broadcast %88 : vector<16x1xf32> to vector<16x32xf32>
    %90 = arith.subf %84, %89 : vector<16x32xf32>
    %91 = arith.mulf %90, %90 : vector<16x32xf32>
    %cst_42 = arith.constant dense<0.000000e+00> : vector<16xf32>
    %92 = vector.multi_reduction <add>, %91, %cst_42 [1] : vector<16x32xf32> to vector<16xf32>
    %93 = vector.shape_cast %92 : vector<16xf32> to vector<16x1xf32>
    %cst_43 = arith.constant 3.200000e+01 : f32
    %94 = vector.broadcast %cst_43 : f32 to vector<16x1xf32>
    %95 = arith.divf %93, %94 : vector<16x1xf32>
    %cst_44 = arith.constant 9.99999997E-7 : f32
    %96 = vector.broadcast %cst_44 : f32 to vector<16x1xf32>
    %97 = arith.addf %95, %96 : vector<16x1xf32>
    %98 = math.rsqrt %97 : vector<16x1xf32>
    %99 = vector.broadcast %98 : vector<16x1xf32> to vector<16x32xf32>
    %100 = arith.mulf %90, %99 : vector<16x32xf32>
    %101 = vector.broadcast %19 : vector<1x32xf32> to vector<16x32xf32>
    %102 = arith.mulf %100, %101 : vector<16x32xf32>
    %103 = vector.broadcast %20 : vector<1x32xf32> to vector<16x32xf32>
    %104 = arith.addf %102, %103 : vector<16x32xf32>
    %105 = arith.truncf %104 : vector<16x32xf32> to vector<16x32xbf16>
    %cst_45 = arith.constant dense<0.000000e+00> : vector<16x128xf32>
    %106 = tpu.matmul %105, %12, %cst_45 {dimension_numbers = #tpu.dot_dimension_numbers<[1], [0], [0], [1], [0, 0, 1, 1], [], []>} : vector<16x32xbf16>, vector<32x128xbf16>, vector<16x128xf32> -> vector<16x128xf32>
    %107 = vector.broadcast %21 : vector<1x128xf32> to vector<16x128xf32>
    %108 = arith.addf %106, %107 : vector<16x128xf32>
    %cst_46 = arith.constant 5.000000e-01 : f32
    %109 = vector.broadcast %cst_46 : f32 to vector<16x128xf32>
    %110 = arith.mulf %109, %108 : vector<16x128xf32>
    %cst_47 = arith.constant 0.707106769 : f32
    %111 = vector.broadcast %cst_47 : f32 to vector<16x128xf32>
    %112 = arith.mulf %108, %111 : vector<16x128xf32>
    %cst_48 = arith.constant 0.000000e+00 : f32
    %113 = vector.broadcast %cst_48 : f32 to vector<16x128xf32>
    %114 = arith.cmpf oge, %112, %113 : vector<16x128xf32>
    %cst_49 = arith.constant 1.000000e+00 : f32
    %cst_50 = arith.constant -1.000000e+00 : f32
    %115 = vector.broadcast %cst_49 : f32 to vector<16x128xf32>
    %116 = vector.broadcast %cst_50 : f32 to vector<16x128xf32>
    %117 = arith.select %114, %115, %116 : vector<16x128xi1>, vector<16x128xf32>
    %118 = math.absf %112 : vector<16x128xf32>
    %cst_51 = arith.constant 0.327591091 : f32
    %119 = vector.broadcast %cst_51 : f32 to vector<16x128xf32>
    %120 = arith.mulf %119, %118 : vector<16x128xf32>
    %cst_52 = arith.constant 1.000000e+00 : f32
    %121 = vector.broadcast %cst_52 : f32 to vector<16x128xf32>
    %122 = arith.addf %121, %120 : vector<16x128xf32>
    %cst_53 = arith.constant 1.000000e+00 : f32
    %123 = vector.broadcast %cst_53 : f32 to vector<16x128xf32>
    %124 = arith.divf %123, %122 : vector<16x128xf32>
    %cst_54 = arith.constant 1.06140542 : f32
    %125 = vector.broadcast %cst_54 : f32 to vector<16x128xf32>
    %126 = arith.mulf %125, %124 : vector<16x128xf32>
    %cst_55 = arith.constant -1.45315206 : f32
    %127 = vector.broadcast %cst_55 : f32 to vector<16x128xf32>
    %128 = arith.addf %126, %127 : vector<16x128xf32>
    %129 = arith.mulf %128, %124 : vector<16x128xf32>
    %cst_56 = arith.constant 1.42141378 : f32
    %130 = vector.broadcast %cst_56 : f32 to vector<16x128xf32>
    %131 = arith.addf %129, %130 : vector<16x128xf32>
    %132 = arith.mulf %131, %124 : vector<16x128xf32>
    %cst_57 = arith.constant -0.284496725 : f32
    %133 = vector.broadcast %cst_57 : f32 to vector<16x128xf32>
    %134 = arith.addf %132, %133 : vector<16x128xf32>
    %135 = arith.mulf %134, %124 : vector<16x128xf32>
    %cst_58 = arith.constant 0.254829586 : f32
    %136 = vector.broadcast %cst_58 : f32 to vector<16x128xf32>
    %137 = arith.addf %135, %136 : vector<16x128xf32>
    %138 = arith.mulf %137, %124 : vector<16x128xf32>
    %cst_59 = arith.constant 0.000000e+00 : f32
    %139 = vector.broadcast %cst_59 : f32 to vector<16x128xf32>
    %140 = arith.subf %139, %118 : vector<16x128xf32>
    %141 = arith.mulf %140, %118 : vector<16x128xf32>
    %142 = math.exp %141 : vector<16x128xf32>
    %143 = arith.mulf %138, %142 : vector<16x128xf32>
    %cst_60 = arith.constant 1.000000e+00 : f32
    %144 = vector.broadcast %cst_60 : f32 to vector<16x128xf32>
    %145 = arith.subf %144, %143 : vector<16x128xf32>
    %146 = arith.mulf %117, %145 : vector<16x128xf32>
    %cst_61 = arith.constant 1.000000e+00 : f32
    %147 = vector.broadcast %cst_61 : f32 to vector<16x128xf32>
    %148 = arith.addf %147, %146 : vector<16x128xf32>
    %149 = arith.mulf %110, %148 : vector<16x128xf32>
    %150 = arith.truncf %149 : vector<16x128xf32> to vector<16x128xbf16>
    %cst_62 = arith.constant dense<0.000000e+00> : vector<16x32xf32>
    %151 = tpu.matmul %150, %11, %cst_62 {dimension_numbers = #tpu.dot_dimension_numbers<[1], [0], [0], [1], [0, 0, 1, 1], [], []>} : vector<16x128xbf16>, vector<128x32xbf16>, vector<16x32xf32> -> vector<16x32xf32>
    %152 = arith.addf %84, %151 : vector<16x32xf32>
    %153 = vector.broadcast %22 : vector<1x32xf32> to vector<16x32xf32>
    %154 = arith.addf %152, %153 : vector<16x32xf32>
    %c512 = arith.constant 512 : index
    %c0_63 = arith.constant 0 : index
    %155 = vector.load %arg4[%c512, %c0_63] : memref<768x32xbf16, #tpu.memory_space<vmem>>, vector<32x32xbf16>
    %c544 = arith.constant 544 : index
    %c0_64 = arith.constant 0 : index
    %156 = vector.load %arg4[%c544, %c0_64] : memref<768x32xbf16, #tpu.memory_space<vmem>>, vector<32x32xbf16>
    %c576 = arith.constant 576 : index
    %c0_65 = arith.constant 0 : index
    %157 = vector.load %arg4[%c576, %c0_65] : memref<768x32xbf16, #tpu.memory_space<vmem>>, vector<32x32xbf16>
    %c608 = arith.constant 608 : index
    %c0_66 = arith.constant 0 : index
    %158 = vector.load %arg4[%c608, %c0_66] : memref<768x32xbf16, #tpu.memory_space<vmem>>, vector<32x32xbf16>
    %c640 = arith.constant 640 : index
    %c0_67 = arith.constant 0 : index
    %159 = vector.load %arg4[%c640, %c0_67] : memref<768x32xbf16, #tpu.memory_space<vmem>>, vector<128x32xbf16>
    %c32 = arith.constant 32 : index
    %c0_68 = arith.constant 0 : index
    %160 = vector.load %arg5[%c32, %c0_68] : memref<96x128xbf16, #tpu.memory_space<vmem>>, vector<32x128xbf16>
    %c10 = arith.constant 10 : index
    %c0_69 = arith.constant 0 : index
    %161 = vector.load %arg6[%c10, %c0_69] : memref<23x128xf32, #tpu.memory_space<vmem>>, vector<1x32xf32>
    %c11 = arith.constant 11 : index
    %c0_70 = arith.constant 0 : index
    %162 = vector.load %arg6[%c11, %c0_70] : memref<23x128xf32, #tpu.memory_space<vmem>>, vector<1x32xf32>
    %c12 = arith.constant 12 : index
    %c0_71 = arith.constant 0 : index
    %163 = vector.load %arg6[%c12, %c0_71] : memref<23x128xf32, #tpu.memory_space<vmem>>, vector<1x32xf32>
    %c13 = arith.constant 13 : index
    %c0_72 = arith.constant 0 : index
    %164 = vector.load %arg6[%c13, %c0_72] : memref<23x128xf32, #tpu.memory_space<vmem>>, vector<1x32xf32>
    %c14 = arith.constant 14 : index
    %c0_73 = arith.constant 0 : index
    %165 = vector.load %arg6[%c14, %c0_73] : memref<23x128xf32, #tpu.memory_space<vmem>>, vector<1x32xf32>
    %c15 = arith.constant 15 : index
    %c0_74 = arith.constant 0 : index
    %166 = vector.load %arg6[%c15, %c0_74] : memref<23x128xf32, #tpu.memory_space<vmem>>, vector<1x32xf32>
    %c16 = arith.constant 16 : index
    %c0_75 = arith.constant 0 : index
    %167 = vector.load %arg6[%c16, %c0_75] : memref<23x128xf32, #tpu.memory_space<vmem>>, vector<1x32xf32>
    %c17 = arith.constant 17 : index
    %c0_76 = arith.constant 0 : index
    %168 = vector.load %arg6[%c17, %c0_76] : memref<23x128xf32, #tpu.memory_space<vmem>>, vector<1x32xf32>
    %c18 = arith.constant 18 : index
    %c0_77 = arith.constant 0 : index
    %169 = vector.load %arg6[%c18, %c0_77] : memref<23x128xf32, #tpu.memory_space<vmem>>, vector<1x128xf32>
    %c19 = arith.constant 19 : index
    %c0_78 = arith.constant 0 : index
    %170 = vector.load %arg6[%c19, %c0_78] : memref<23x128xf32, #tpu.memory_space<vmem>>, vector<1x32xf32>
    %cst_79 = arith.constant dense<0.000000e+00> : vector<16xf32>
    %171 = vector.multi_reduction <add>, %154, %cst_79 [1] : vector<16x32xf32> to vector<16xf32>
    %172 = vector.shape_cast %171 : vector<16xf32> to vector<16x1xf32>
    %cst_80 = arith.constant 3.200000e+01 : f32
    %173 = vector.broadcast %cst_80 : f32 to vector<16x1xf32>
    %174 = arith.divf %172, %173 : vector<16x1xf32>
    %175 = vector.broadcast %174 : vector<16x1xf32> to vector<16x32xf32>
    %176 = arith.subf %154, %175 : vector<16x32xf32>
    %177 = arith.mulf %176, %176 : vector<16x32xf32>
    %cst_81 = arith.constant dense<0.000000e+00> : vector<16xf32>
    %178 = vector.multi_reduction <add>, %177, %cst_81 [1] : vector<16x32xf32> to vector<16xf32>
    %179 = vector.shape_cast %178 : vector<16xf32> to vector<16x1xf32>
    %cst_82 = arith.constant 3.200000e+01 : f32
    %180 = vector.broadcast %cst_82 : f32 to vector<16x1xf32>
    %181 = arith.divf %179, %180 : vector<16x1xf32>
    %cst_83 = arith.constant 9.99999997E-7 : f32
    %182 = vector.broadcast %cst_83 : f32 to vector<16x1xf32>
    %183 = arith.addf %181, %182 : vector<16x1xf32>
    %184 = math.rsqrt %183 : vector<16x1xf32>
    %185 = vector.broadcast %184 : vector<16x1xf32> to vector<16x32xf32>
    %186 = arith.mulf %176, %185 : vector<16x32xf32>
    %187 = vector.broadcast %161 : vector<1x32xf32> to vector<16x32xf32>
    %188 = arith.mulf %186, %187 : vector<16x32xf32>
    %189 = vector.broadcast %162 : vector<1x32xf32> to vector<16x32xf32>
    %190 = arith.addf %188, %189 : vector<16x32xf32>
    %191 = arith.truncf %190 : vector<16x32xf32> to vector<16x32xbf16>
    %cst_84 = arith.constant dense<0.000000e+00> : vector<16x32xf32>
    %192 = tpu.matmul %191, %155, %cst_84 {dimension_numbers = #tpu.dot_dimension_numbers<[1], [0], [0], [1], [0, 0, 1, 1], [], []>} : vector<16x32xbf16>, vector<32x32xbf16>, vector<16x32xf32> -> vector<16x32xf32>
    %193 = vector.broadcast %163 : vector<1x32xf32> to vector<16x32xf32>
    %194 = arith.addf %192, %193 : vector<16x32xf32>
    %cst_85 = arith.constant dense<0.000000e+00> : vector<16x32xf32>
    %195 = tpu.matmul %191, %156, %cst_85 {dimension_numbers = #tpu.dot_dimension_numbers<[1], [0], [0], [1], [0, 0, 1, 1], [], []>} : vector<16x32xbf16>, vector<32x32xbf16>, vector<16x32xf32> -> vector<16x32xf32>
    %196 = vector.broadcast %164 : vector<1x32xf32> to vector<16x32xf32>
    %197 = arith.addf %195, %196 : vector<16x32xf32>
    %cst_86 = arith.constant dense<0.000000e+00> : vector<16x32xf32>
    %198 = tpu.matmul %191, %157, %cst_86 {dimension_numbers = #tpu.dot_dimension_numbers<[1], [0], [0], [1], [0, 0, 1, 1], [], []>} : vector<16x32xbf16>, vector<32x32xbf16>, vector<16x32xf32> -> vector<16x32xf32>
    %199 = vector.broadcast %165 : vector<1x32xf32> to vector<16x32xf32>
    %200 = arith.addf %198, %199 : vector<16x32xf32>
    %201 = tpu.concatenate %194, %194, %194, %194 in 0 : vector<16x32xf32>, vector<16x32xf32>, vector<16x32xf32>, vector<16x32xf32> -> vector<64x32xf32>
    %202 = arith.mulf %201, %0 : vector<64x32xf32>
    %203 = arith.truncf %202 : vector<64x32xf32> to vector<64x32xbf16>
    %204 = arith.truncf %197 : vector<16x32xf32> to vector<16x32xbf16>
    %cst_87 = arith.constant dense<0.000000e+00> : vector<64x16xf32>
    %205 = tpu.matmul %203, %204, %cst_87 {dimension_numbers = #tpu.dot_dimension_numbers<[1], [1], [0], [0], [0, 0, 1, 0], [], []>} : vector<64x32xbf16>, vector<16x32xbf16>, vector<64x16xf32> -> vector<64x16xf32>
    %206 = arith.addf %205, %1 : vector<64x16xf32>
    %cst_88 = arith.constant dense<0xFF800000> : vector<64xf32>
    %207 = vector.multi_reduction <maximumf>, %206, %cst_88 [1] : vector<64x16xf32> to vector<64xf32>
    %208 = vector.shape_cast %207 : vector<64xf32> to vector<64x1xf32>
    %209 = vector.broadcast %208 : vector<64x1xf32> to vector<64x16xf32>
    %210 = arith.subf %206, %209 : vector<64x16xf32>
    %211 = math.exp %210 : vector<64x16xf32>
    %cst_89 = arith.constant dense<0.000000e+00> : vector<64xf32>
    %212 = vector.multi_reduction <add>, %211, %cst_89 [1] : vector<64x16xf32> to vector<64xf32>
    %213 = vector.shape_cast %212 : vector<64xf32> to vector<64x1xf32>
    %214 = tpu.reciprocal %213 {approx = true} : vector<64x1xf32> -> vector<64x1xf32>
    %215 = vector.broadcast %214 : vector<64x1xf32> to vector<64x16xf32>
    %216 = arith.mulf %211, %215 : vector<64x16xf32>
    %217 = arith.truncf %216 : vector<64x16xf32> to vector<64x16xbf16>
    %218 = arith.truncf %200 : vector<16x32xf32> to vector<16x32xbf16>
    %cst_90 = arith.constant dense<0.000000e+00> : vector<64x32xf32>
    %219 = tpu.matmul %217, %218, %cst_90 {dimension_numbers = #tpu.dot_dimension_numbers<[1], [0], [0], [1], [0, 0, 1, 1], [], []>} : vector<64x16xbf16>, vector<16x32xbf16>, vector<64x32xf32> -> vector<64x32xf32>
    %220 = arith.mulf %219, %0 : vector<64x32xf32>
    %221 = vector.extract_strided_slice %220 {offsets = [0, 0], sizes = [16, 32], strides = [1, 1]} : vector<64x32xf32> to vector<16x32xf32>
    %222 = vector.extract_strided_slice %220 {offsets = [16, 0], sizes = [16, 32], strides = [1, 1]} : vector<64x32xf32> to vector<16x32xf32>
    %223 = arith.addf %221, %222 : vector<16x32xf32>
    %224 = vector.extract_strided_slice %220 {offsets = [32, 0], sizes = [16, 32], strides = [1, 1]} : vector<64x32xf32> to vector<16x32xf32>
    %225 = arith.addf %223, %224 : vector<16x32xf32>
    %226 = vector.extract_strided_slice %220 {offsets = [48, 0], sizes = [16, 32], strides = [1, 1]} : vector<64x32xf32> to vector<16x32xf32>
    %227 = arith.addf %225, %226 : vector<16x32xf32>
    %228 = arith.truncf %227 : vector<16x32xf32> to vector<16x32xbf16>
    %cst_91 = arith.constant dense<0.000000e+00> : vector<16x32xf32>
    %229 = tpu.matmul %228, %158, %cst_91 {dimension_numbers = #tpu.dot_dimension_numbers<[1], [0], [0], [1], [0, 0, 1, 1], [], []>} : vector<16x32xbf16>, vector<32x32xbf16>, vector<16x32xf32> -> vector<16x32xf32>
    %230 = arith.addf %154, %229 : vector<16x32xf32>
    %231 = vector.broadcast %166 : vector<1x32xf32> to vector<16x32xf32>
    %232 = arith.addf %230, %231 : vector<16x32xf32>
    %cst_92 = arith.constant dense<0.000000e+00> : vector<16xf32>
    %233 = vector.multi_reduction <add>, %232, %cst_92 [1] : vector<16x32xf32> to vector<16xf32>
    %234 = vector.shape_cast %233 : vector<16xf32> to vector<16x1xf32>
    %cst_93 = arith.constant 3.200000e+01 : f32
    %235 = vector.broadcast %cst_93 : f32 to vector<16x1xf32>
    %236 = arith.divf %234, %235 : vector<16x1xf32>
    %237 = vector.broadcast %236 : vector<16x1xf32> to vector<16x32xf32>
    %238 = arith.subf %232, %237 : vector<16x32xf32>
    %239 = arith.mulf %238, %238 : vector<16x32xf32>
    %cst_94 = arith.constant dense<0.000000e+00> : vector<16xf32>
    %240 = vector.multi_reduction <add>, %239, %cst_94 [1] : vector<16x32xf32> to vector<16xf32>
    %241 = vector.shape_cast %240 : vector<16xf32> to vector<16x1xf32>
    %cst_95 = arith.constant 3.200000e+01 : f32
    %242 = vector.broadcast %cst_95 : f32 to vector<16x1xf32>
    %243 = arith.divf %241, %242 : vector<16x1xf32>
    %cst_96 = arith.constant 9.99999997E-7 : f32
    %244 = vector.broadcast %cst_96 : f32 to vector<16x1xf32>
    %245 = arith.addf %243, %244 : vector<16x1xf32>
    %246 = math.rsqrt %245 : vector<16x1xf32>
    %247 = vector.broadcast %246 : vector<16x1xf32> to vector<16x32xf32>
    %248 = arith.mulf %238, %247 : vector<16x32xf32>
    %249 = vector.broadcast %167 : vector<1x32xf32> to vector<16x32xf32>
    %250 = arith.mulf %248, %249 : vector<16x32xf32>
    %251 = vector.broadcast %168 : vector<1x32xf32> to vector<16x32xf32>
    %252 = arith.addf %250, %251 : vector<16x32xf32>
    %253 = arith.truncf %252 : vector<16x32xf32> to vector<16x32xbf16>
    %cst_97 = arith.constant dense<0.000000e+00> : vector<16x128xf32>
    %254 = tpu.matmul %253, %160, %cst_97 {dimension_numbers = #tpu.dot_dimension_numbers<[1], [0], [0], [1], [0, 0, 1, 1], [], []>} : vector<16x32xbf16>, vector<32x128xbf16>, vector<16x128xf32> -> vector<16x128xf32>
    %255 = vector.broadcast %169 : vector<1x128xf32> to vector<16x128xf32>
    %256 = arith.addf %254, %255 : vector<16x128xf32>
    %cst_98 = arith.constant 5.000000e-01 : f32
    %257 = vector.broadcast %cst_98 : f32 to vector<16x128xf32>
    %258 = arith.mulf %257, %256 : vector<16x128xf32>
    %cst_99 = arith.constant 0.707106769 : f32
    %259 = vector.broadcast %cst_99 : f32 to vector<16x128xf32>
    %260 = arith.mulf %256, %259 : vector<16x128xf32>
    %cst_100 = arith.constant 0.000000e+00 : f32
    %261 = vector.broadcast %cst_100 : f32 to vector<16x128xf32>
    %262 = arith.cmpf oge, %260, %261 : vector<16x128xf32>
    %cst_101 = arith.constant 1.000000e+00 : f32
    %cst_102 = arith.constant -1.000000e+00 : f32
    %263 = vector.broadcast %cst_101 : f32 to vector<16x128xf32>
    %264 = vector.broadcast %cst_102 : f32 to vector<16x128xf32>
    %265 = arith.select %262, %263, %264 : vector<16x128xi1>, vector<16x128xf32>
    %266 = math.absf %260 : vector<16x128xf32>
    %cst_103 = arith.constant 0.327591091 : f32
    %267 = vector.broadcast %cst_103 : f32 to vector<16x128xf32>
    %268 = arith.mulf %267, %266 : vector<16x128xf32>
    %cst_104 = arith.constant 1.000000e+00 : f32
    %269 = vector.broadcast %cst_104 : f32 to vector<16x128xf32>
    %270 = arith.addf %269, %268 : vector<16x128xf32>
    %cst_105 = arith.constant 1.000000e+00 : f32
    %271 = vector.broadcast %cst_105 : f32 to vector<16x128xf32>
    %272 = arith.divf %271, %270 : vector<16x128xf32>
    %cst_106 = arith.constant 1.06140542 : f32
    %273 = vector.broadcast %cst_106 : f32 to vector<16x128xf32>
    %274 = arith.mulf %273, %272 : vector<16x128xf32>
    %cst_107 = arith.constant -1.45315206 : f32
    %275 = vector.broadcast %cst_107 : f32 to vector<16x128xf32>
    %276 = arith.addf %274, %275 : vector<16x128xf32>
    %277 = arith.mulf %276, %272 : vector<16x128xf32>
    %cst_108 = arith.constant 1.42141378 : f32
    %278 = vector.broadcast %cst_108 : f32 to vector<16x128xf32>
    %279 = arith.addf %277, %278 : vector<16x128xf32>
    %280 = arith.mulf %279, %272 : vector<16x128xf32>
    %cst_109 = arith.constant -0.284496725 : f32
    %281 = vector.broadcast %cst_109 : f32 to vector<16x128xf32>
    %282 = arith.addf %280, %281 : vector<16x128xf32>
    %283 = arith.mulf %282, %272 : vector<16x128xf32>
    %cst_110 = arith.constant 0.254829586 : f32
    %284 = vector.broadcast %cst_110 : f32 to vector<16x128xf32>
    %285 = arith.addf %283, %284 : vector<16x128xf32>
    %286 = arith.mulf %285, %272 : vector<16x128xf32>
    %cst_111 = arith.constant 0.000000e+00 : f32
    %287 = vector.broadcast %cst_111 : f32 to vector<16x128xf32>
    %288 = arith.subf %287, %266 : vector<16x128xf32>
    %289 = arith.mulf %288, %266 : vector<16x128xf32>
    %290 = math.exp %289 : vector<16x128xf32>
    %291 = arith.mulf %286, %290 : vector<16x128xf32>
    %cst_112 = arith.constant 1.000000e+00 : f32
    %292 = vector.broadcast %cst_112 : f32 to vector<16x128xf32>
    %293 = arith.subf %292, %291 : vector<16x128xf32>
    %294 = arith.mulf %265, %293 : vector<16x128xf32>
    %cst_113 = arith.constant 1.000000e+00 : f32
    %295 = vector.broadcast %cst_113 : f32 to vector<16x128xf32>
    %296 = arith.addf %295, %294 : vector<16x128xf32>
    %297 = arith.mulf %258, %296 : vector<16x128xf32>
    %298 = arith.truncf %297 : vector<16x128xf32> to vector<16x128xbf16>
    %cst_114 = arith.constant dense<0.000000e+00> : vector<16x32xf32>
    %299 = tpu.matmul %298, %159, %cst_114 {dimension_numbers = #tpu.dot_dimension_numbers<[1], [0], [0], [1], [0, 0, 1, 1], [], []>} : vector<16x128xbf16>, vector<128x32xbf16>, vector<16x32xf32> -> vector<16x32xf32>
    %300 = arith.addf %232, %299 : vector<16x32xf32>
    %301 = vector.broadcast %170 : vector<1x32xf32> to vector<16x32xf32>
    %302 = arith.addf %300, %301 : vector<16x32xf32>
    %c20 = arith.constant 20 : index
    %c0_115 = arith.constant 0 : index
    %303 = vector.load %arg6[%c20, %c0_115] : memref<23x128xf32, #tpu.memory_space<vmem>>, vector<1x32xf32>
    %c21 = arith.constant 21 : index
    %c0_116 = arith.constant 0 : index
    %304 = vector.load %arg6[%c21, %c0_116] : memref<23x128xf32, #tpu.memory_space<vmem>>, vector<1x32xf32>
    %cst_117 = arith.constant dense<0.000000e+00> : vector<16xf32>
    %305 = vector.multi_reduction <add>, %302, %cst_117 [1] : vector<16x32xf32> to vector<16xf32>
    %306 = vector.shape_cast %305 : vector<16xf32> to vector<16x1xf32>
    %cst_118 = arith.constant 3.200000e+01 : f32
    %307 = vector.broadcast %cst_118 : f32 to vector<16x1xf32>
    %308 = arith.divf %306, %307 : vector<16x1xf32>
    %309 = vector.broadcast %308 : vector<16x1xf32> to vector<16x32xf32>
    %310 = arith.subf %302, %309 : vector<16x32xf32>
    %311 = arith.mulf %310, %310 : vector<16x32xf32>
    %cst_119 = arith.constant dense<0.000000e+00> : vector<16xf32>
    %312 = vector.multi_reduction <add>, %311, %cst_119 [1] : vector<16x32xf32> to vector<16xf32>
    %313 = vector.shape_cast %312 : vector<16xf32> to vector<16x1xf32>
    %cst_120 = arith.constant 3.200000e+01 : f32
    %314 = vector.broadcast %cst_120 : f32 to vector<16x1xf32>
    %315 = arith.divf %313, %314 : vector<16x1xf32>
    %cst_121 = arith.constant 9.99999997E-7 : f32
    %316 = vector.broadcast %cst_121 : f32 to vector<16x1xf32>
    %317 = arith.addf %315, %316 : vector<16x1xf32>
    %318 = math.rsqrt %317 : vector<16x1xf32>
    %319 = vector.broadcast %318 : vector<16x1xf32> to vector<16x32xf32>
    %320 = arith.mulf %310, %319 : vector<16x32xf32>
    %321 = vector.broadcast %303 : vector<1x32xf32> to vector<16x32xf32>
    %322 = arith.mulf %320, %321 : vector<16x32xf32>
    %323 = vector.broadcast %304 : vector<1x32xf32> to vector<16x32xf32>
    %324 = arith.addf %322, %323 : vector<16x32xf32>
    %325 = arith.truncf %324 : vector<16x32xf32> to vector<16x32xbf16>
    %c64 = arith.constant 64 : index
    %c0_122 = arith.constant 0 : index
    %326 = vector.load %arg5[%c64, %c0_122] : memref<96x128xbf16, #tpu.memory_space<vmem>>, vector<32x128xbf16>
    %cst_123 = arith.constant dense<0.000000e+00> : vector<16x128xf32>
    %327 = tpu.matmul %325, %326, %cst_123 {dimension_numbers = #tpu.dot_dimension_numbers<[1], [0], [0], [1], [0, 0, 1, 1], [], []>} : vector<16x32xbf16>, vector<32x128xbf16>, vector<16x128xf32> -> vector<16x128xf32>
    %c22 = arith.constant 22 : index
    %c0_124 = arith.constant 0 : index
    %328 = vector.load %arg6[%c22, %c0_124] : memref<23x128xf32, #tpu.memory_space<vmem>>, vector<1x128xf32>
    %329 = vector.broadcast %328 : vector<1x128xf32> to vector<16x128xf32>
    %330 = arith.addf %327, %329 : vector<16x128xf32>
    %c0_125 = arith.constant 0 : index
    %c0_126 = arith.constant 0 : index
    %331 = vector.load %arg7[%c0_125, %c0_126] : memref<16x128xf32, #tpu.memory_space<vmem>>, vector<16x128xf32>
    tpu.vector_store %arg7[%c0_125, %c0_126], %330 {strides = array<i32>} : memref<16x128xf32, #tpu.memory_space<vmem>>, vector<16x128xf32>,
    return
  }
}

</mosaic_0001>

<llo_original>
// kernel: vit_forward.1
$region0: #{vit_forward.1}
  #allocation0 [shape = 'u32[]', space=smem, size = 0x4, offset = 0x4, fixed_abs, tag = 'smem constant byte address 0x4 - core index']
  #allocation1 [shape = 'u32[144,128]{1,0:T(1,128)}', space=vmem, size = 0x12000, scoped, tag = 'internal scratch']
  %s0 = inlined_call_operand.vmem [shape: bf16[16,256], index: 0, kind: input, shape index: {}]
  %s1 = inlined_call_operand.vmem [shape: f32[16,32], index: 1, kind: input, shape index: {}]
  %s2 = inlined_call_operand.vmem [shape: f32[64,16], index: 2, kind: input, shape index: {}]
  %s3 = inlined_call_operand.vmem [shape: f32[64,32], index: 3, kind: input, shape index: {}]
  %s4 = inlined_call_operand.vmem [shape: bf16[768,32], index: 4, kind: input, shape index: {}]
  %s5 = inlined_call_operand.vmem [shape: bf16[96,128], index: 5, kind: input, shape index: {}]
  %s6 = inlined_call_operand.vmem [shape: f32[23,128], index: 6, kind: input, shape index: {}]
  %s7 = inlined_call_operand.vmem [shape: f32[16,128], index: 7, kind: output, shape index: {}]
  %s8 = sld [smem:[#allocation0]]
  $region38: #{vit_forward.1} parent=0
    _
  %s10 = ssub.s32 1, %s8
  %s11 = scalar_select 0, %s10, %s8
  // Predicated region
  $region2: #{vit_forward.1} parent=0 // pred_check
    _
  $region3: #{vit_forward.1} parent=0 // pred_check_branch
    %13 = sbr.rel (0) target = $region5
  $region4: #{vit_forward.1} parent=0 // pred_region
    _
  $region5: #{vit_forward.1} parent=0 // pred_fallthru
    _
  // Predicated region
  $region6: #{vit_forward.1} parent=0 // pred_check
    _
  $region7: #{vit_forward.1} parent=0 // pred_check_branch
    %15 = sbr.rel (0) target = $region9
  $region8: #{vit_forward.1} parent=0 // pred_region
    _
  $region9: #{vit_forward.1} parent=0 // pred_fallthru
    _
  // Predicated region
  $region10: #{vit_forward.1} parent=0 // pred_check
    _
  $region11: #{vit_forward.1} parent=0 // pred_check_branch
    %17 = sbr.rel (0) target = $region13
  $region12: #{vit_forward.1} parent=0 // pred_region
    _
  $region13: #{vit_forward.1} parent=0 // pred_fallthru
    _
  // Predicated region
  $region14: #{vit_forward.1} parent=0 // pred_check
    _
  $region15: #{vit_forward.1} parent=0 // pred_check_branch
    %19 = sbr.rel (0) target = $region17
  $region16: #{vit_forward.1} parent=0 // pred_region
    _
  $region17: #{vit_forward.1} parent=0 // pred_fallthru
    _
  // Predicated region
  $region18: #{vit_forward.1} parent=0 // pred_check
    _
  $region19: #{vit_forward.1} parent=0 // pred_check_branch
    %21 = sbr.rel (0) target = $region21
  $region20: #{vit_forward.1} parent=0 // pred_region
    _
  $region21: #{vit_forward.1} parent=0 // pred_fallthru
    _
  // Predicated region
  $region22: #{vit_forward.1} parent=0 // pred_check
    _
  $region23: #{vit_forward.1} parent=0 // pred_check_branch
    %23 = sbr.rel (0) target = $region25
  $region24: #{vit_forward.1} parent=0 // pred_region
    _
  $region25: #{vit_forward.1} parent=0 // pred_fallthru
    _
  // Predicated region
  $region26: #{vit_forward.1} parent=0 // pred_check
    _
  $region27: #{vit_forward.1} parent=0 // pred_check_branch
    %25 = sbr.rel (0) target = $region29
  $region28: #{vit_forward.1} parent=0 // pred_region
    _
  $region29: #{vit_forward.1} parent=0 // pred_fallthru
    _
  %v27 = vld [vmem:[%s3] sm:$0xff]
  %v28 = vld [vmem:[%s3 + $0x8] sm:$0xff]
  %v29 = vld [vmem:[%s3 + $0x10] sm:$0xff]
  %v30 = vld [vmem:[%s3 + $0x18] sm:$0xff]
  %v31 = vld [vmem:[%s3 + $0x20] sm:$0xff]
  %v32 = vld [vmem:[%s3 + $0x28] sm:$0xff]
  %v33 = vld [vmem:[%s3 + $0x30] sm:$0xff]
  %v34 = vld [vmem:[%s3 + $0x38] sm:$0xff]
  %v35 = vld [vmem:[%s2] sm:$0xff]
  %v36 = vld [vmem:[%s2 + $0x8] sm:$0xff]
  %v37 = vld [vmem:[%s2 + $0x10] sm:$0xff]
  %v38 = vld [vmem:[%s2 + $0x18] sm:$0xff]
  %v39 = vld [vmem:[%s2 + $0x20] sm:$0xff]
  %v40 = vld [vmem:[%s2 + $0x28] sm:$0xff]
  %v41 = vld [vmem:[%s2 + $0x30] sm:$0xff]
  %v42 = vld [vmem:[%s2 + $0x38] sm:$0xff]
  %v43 = vld [vmem:[%s0] sm:$0xff]
  %v44 = vld [vmem:[%s0 + $0x8] sm:$0xff]
  %v45 = vld [vmem:[%s4] sm:$0xf]
  %v46 = vld [vmem:[%s4 + $0x4] sm:$0xf]
  %v47 = vld [vmem:[%s4 + $0x8] sm:$0xf]
  %v48 = vld [vmem:[%s4 + $0xc] sm:$0xf]
  %v49 = vld [vmem:[%s4 + $0x10] sm:$0xf]
  %v50 = vld [vmem:[%s4 + $0x14] sm:$0xf]
  %v51 = vld [vmem:[%s4 + $0x18] sm:$0xf]
  %v52 = vld [vmem:[%s4 + $0x1c] sm:$0xf]
  %v53 = vld [vmem:[%s4 + $0x20] sm:$0xf]
  %v54 = vld [vmem:[%s4 + $0x24] sm:$0xf]
  %v55 = vld [vmem:[%s4 + $0x28] sm:$0xf]
  %v56 = vld [vmem:[%s4 + $0x2c] sm:$0xf]
  %v57 = vld [vmem:[%s4 + $0x30] sm:$0xf]
  %v58 = vld [vmem:[%s4 + $0x34] sm:$0xf]
  %v59 = vld [vmem:[%s4 + $0x38] sm:$0xf]
  %v60 = vld [vmem:[%s4 + $0x3c] sm:$0xf]
  %v61 = vld [vmem:[%s4 + $0x40] sm:$0xf]
  %v62 = vld [vmem:[%s4 + $0x44] sm:$0xf]
  %v63 = vld [vmem:[%s4 + $0x48] sm:$0xf]
  %v64 = vld [vmem:[%s4 + $0x4c] sm:$0xf]
  %v65 = vld [vmem:[%s4 + $0x50] sm:$0xf]
  %v66 = vld [vmem:[%s4 + $0x54] sm:$0xf]
  %v67 = vld [vmem:[%s4 + $0x58] sm:$0xf]
  %v68 = vld [vmem:[%s4 + $0x5c] sm:$0xf]
  %v69 = vld [vmem:[%s4 + $0x60] sm:$0xf]
  %v70 = vld [vmem:[%s4 + $0x64] sm:$0xf]
  %v71 = vld [vmem:[%s4 + $0x68] sm:$0xf]
  %v72 = vld [vmem:[%s4 + $0x6c] sm:$0xf]
  %v73 = vld [vmem:[%s4 + $0x70] sm:$0xf]
  %v74 = vld [vmem:[%s4 + $0x74] sm:$0xf]
  %v75 = vld [vmem:[%s4 + $0x78] sm:$0xf]
  %v76 = vld [vmem:[%s4 + $0x7c] sm:$0xf]
  %v77 = vld [vmem:[%s1] sm:$0xff]
  %v78 = vld [vmem:[%s1 + $0x8] sm:$0xff]
  %v81 = vunpack.c.l.b16 %v43
  %v82 = vunpack.c.h.b16 %v43
  %v83 = vunpack.c.l.b16 %v44
  %v84 = vunpack.c.h.b16 %v44
  %v85 = vpack.c.b16 %v83, %v81
  %v86 = vpack.c.b16 %v84, %v82
  %v121 = vunpack.c.l.b16 %v45
  %v122 = vunpack.c.l.b16 %v46
  %v123 = vunpack.c.l.b16 %v47
  %v124 = vunpack.c.l.b16 %v48
  %v125 = vunpack.c.l.b16 %v49
  %v126 = vunpack.c.l.b16 %v50
  %v127 = vunpack.c.l.b16 %v51
  %v128 = vunpack.c.l.b16 %v52
  %v129 = vunpack.c.l.b16 %v53
  %v130 = vunpack.c.l.b16 %v54
  %v131 = vunpack.c.l.b16 %v55
  %v132 = vunpack.c.l.b16 %v56
  %v133 = vunpack.c.l.b16 %v57
  %v134 = vunpack.c.l.b16 %v58
  %v135 = vunpack.c.l.b16 %v59
  %v136 = vunpack.c.l.b16 %v60
  %v137 = vunpack.c.l.b16 %v61
  %v138 = vunpack.c.l.b16 %v62
  %v139 = vunpack.c.l.b16 %v63
  %v140 = vunpack.c.l.b16 %v64
  %v141 = vunpack.c.l.b16 %v65
  %v142 = vunpack.c.l.b16 %v66
  %v143 = vunpack.c.l.b16 %v67
  %v144 = vunpack.c.l.b16 %v68
  %v145 = vunpack.c.l.b16 %v69
  %v146 = vunpack.c.l.b16 %v70
  %v147 = vunpack.c.l.b16 %v71
  %v148 = vunpack.c.l.b16 %v72
  %v149 = vunpack.c.l.b16 %v73
  %v150 = vunpack.c.l.b16 %v74
  %v151 = vunpack.c.l.b16 %v75
  %v152 = vunpack.c.l.b16 %v76
  %v153 = vpack.c.b16 %v122, %v121
  %v154 = vpack.c.b16 %v124, %v123
  %v155 = vpack.c.b16 %v126, %v125
  %v156 = vpack.c.b16 %v128, %v127
  %v157 = vpack.c.b16 %v130, %v129
  %v158 = vpack.c.b16 %v132, %v131
  %v159 = vpack.c.b16 %v134, %v133
  %v160 = vpack.c.b16 %v136, %v135
  %v161 = vpack.c.b16 %v138, %v137
  %v162 = vpack.c.b16 %v140, %v139
  %v163 = vpack.c.b16 %v142, %v141
  %v164 = vpack.c.b16 %v144, %v143
  %v165 = vpack.c.b16 %v146, %v145
  %v166 = vpack.c.b16 %v148, %v147
  %v167 = vpack.c.b16 %v150, %v149
  %v168 = vpack.c.b16 %v152, %v151
  %185 = vmatprep.subr.bf16.mxu0 0
  %186 = vmatpush1.bf16.msra.mxu0 %v153
  %187 = vmatprep.subr.bf16.mxu0 0
  %188 = vmatpush1.bf16.msra.mxu0 %v154
  %189 = vmatprep.subr.bf16.mxu0 0
  %190 = vmatpush1.bf16.msra.mxu0 %v155
  %191 = vmatprep.subr.bf16.mxu0 0
  %192 = vmatpush1.bf16.msra.mxu0 %v156
  %193 = vmatprep.subr.bf16.mxu0 0
  %194 = vmatpush1.bf16.msra.mxu0 %v157
  %195 = vmatprep.subr.bf16.mxu0 0
  %196 = vmatpush1.bf16.msra.mxu0 %v158
  %197 = vmatprep.subr.bf16.mxu0 0
  %198 = vmatpush1.bf16.msra.mxu0 %v159
  %199 = vmatprep.subr.bf16.mxu0 0
  %200 = vmatpush1.bf16.msra.mxu0 %v160
  %201 = vmatprep.subr.bf16.mxu0 0
  %202 = vmatpush1.bf16.msra.mxu0 %v161
  %203 = vmatprep.subr.bf16.mxu0 0
  %204 = vmatpush1.bf16.msra.mxu0 %v162
  %205 = vmatprep.subr.bf16.mxu0 0
  %206 = vmatpush1.bf16.msra.mxu0 %v163
  %207 = vmatprep.subr.bf16.mxu0 0
  %208 = vmatpush1.bf16.msra.mxu0 %v164
  %209 = vmatprep.subr.bf16.mxu0 0
  %210 = vmatpush1.bf16.msra.mxu0 %v165
  %211 = vmatprep.subr.bf16.mxu0 0
  %212 = vmatpush1.bf16.msra.mxu0 %v166
  %213 = vmatprep.subr.bf16.mxu0 0
  %214 = vmatpush1.bf16.msra.mxu0 %v167
  %215 = vmatprep.subr.bf16.mxu0 0
  %216 = vmatpush1.bf16.msra.mxu0 %v168
  %217 = vmatprep.mubr.bf16.mxu0 %v86
  %218 = vmatmul.mubr.bf16.gmra.mrb[0].mxu0 %v85
  %v219 = vpop.f32.mrb[0].mxu0
  %v220 = vadd.f32 %v77, %v219
  %v221 = vpop.f32.mrb[0].mxu0
  %v222 = vpop.f32.mrb[0].mxu0
  %v223 = vadd.f32 %v78, %v222
  %v224 = vpop.f32.mrb[0].mxu0
  %225 = vdwg.mxu0
  %v226 = vld [vmem:[%s4 + $0x80] sm:$0xf]
  %v227 = vld [vmem:[%s4 + $0x84] sm:$0xf]
  %v228 = vld [vmem:[%s4 + $0x88] sm:$0xf]
  %v229 = vld [vmem:[%s4 + $0x8c] sm:$0xf]
  %v230 = vld [vmem:[%s4 + $0x90] sm:$0xf]
  %v231 = vld [vmem:[%s4 + $0x94] sm:$0xf]
  %v232 = vld [vmem:[%s4 + $0x98] sm:$0xf]
  %v233 = vld [vmem:[%s4 + $0x9c] sm:$0xf]
  %v234 = vld [vmem:[%s4 + $0xa0] sm:$0xf]
  %v235 = vld [vmem:[%s4 + $0xa4] sm:$0xf]
  %v236 = vld [vmem:[%s4 + $0xa8] sm:$0xf]
  %v237 = vld [vmem:[%s4 + $0xac] sm:$0xf]
  %v238 = vld [vmem:[%s4 + $0xb0] sm:$0xf]
  %v239 = vld [vmem:[%s4 + $0xb4] sm:$0xf]
  %v240 = vld [vmem:[%s4 + $0xb8] sm:$0xf]
  %v241 = vld [vmem:[%s4 + $0xbc] sm:$0xf]
  %v242 = vld [vmem:[%s4 + $0xc0] sm:$0xf]
  %v243 = vld [vmem:[%s4 + $0xc4] sm:$0xf]
  %v244 = vld [vmem:[%s4 + $0xc8] sm:$0xf]
  %v245 = vld [vmem:[%s4 + $0xcc] sm:$0xf]
  %v246 = vld [vmem:[%s4 + $0xd0] sm:$0xf]
  %v247 = vld [vmem:[%s4 + $0xd4] sm:$0xf]
  %v248 = vld [vmem:[%s4 + $0xd8] sm:$0xf]
  %v249 = vld [vmem:[%s4 + $0xdc] sm:$0xf]
  %v250 = vld [vmem:[%s4 + $0xe0] sm:$0xf]
  %v251 = vld [vmem:[%s4 + $0xe4] sm:$0xf]
  %v252 = vld [vmem:[%s4 + $0xe8] sm:$0xf]
  %v253 = vld [vmem:[%s4 + $0xec] sm:$0xf]
  %v254 = vld [vmem:[%s4 + $0xf0] sm:$0xf]
  %v255 = vld [vmem:[%s4 + $0xf4] sm:$0xf]
  %v256 = vld [vmem:[%s4 + $0xf8] sm:$0xf]
  %v257 = vld [vmem:[%s4 + $0xfc] sm:$0xf]
  %v258 = vld [vmem:[%s5] sm:$0xf]
  %v259 = vld [vmem:[%s5 + $0x4] sm:$0xf]
  %v260 = vld [vmem:[%s5 + $0x8] sm:$0xf]
  %v261 = vld [vmem:[%s5 + $0xc] sm:$0xf]
  %v262 = vld [vmem:[%s6] sm:$0x1]
  %v263 = vld [vmem:[%s6 + $0x1] sm:$0x1]
  %v264 = vld [vmem:[%s6 + $0x2] sm:$0x1]
  %v265 = vld [vmem:[%s6 + $0x3] sm:$0x1]
  %v266 = vld [vmem:[%s6 + $0x4] sm:$0x1]
  %v267 = vld [vmem:[%s6 + $0x5] sm:$0x1]
  %v268 = vld [vmem:[%s6 + $0x6] sm:$0x1]
  %v269 = vld [vmem:[%s6 + $0x7] sm:$0x1]
  %v270 = vld [vmem:[%s6 + $0x8] sm:$0x1]
  %v271 = vld [vmem:[%s6 + $0x9] sm:$0x1]
  %vm272 = vcmask 261120
  %v273 = vsel %vm272, %v220, 0.0
  %274 = vadd.xlane.f32.xlu0 %v273
  %v275 = vpop.xlane.xlu0 %274
  %v276 = vsel %vm272, %v223, 0.0
  %277 = vadd.xlane.f32.xlu0 %v276
  %v278 = vpop.xlane.xlu0 %277
  %v279 = vrcp.pop 32.0
  %v280 = vmul.f32 %v275, %v279
  %v281 = vmul.f32 %v278, %v279
  %v282 = vsub.f32 %v220, %v280
  %v283 = vsub.f32 %v223, %v281
  %v284 = vmul.f32 %v282, %v282
  %v285 = vmul.f32 %v283, %v283
  %v286 = vsel %vm272, %v284, 0.0
  %287 = vadd.xlane.f32.xlu0 %v286
  %v288 = vpop.xlane.xlu0 %287
  %v289 = vsel %vm272, %v285, 0.0
  %290 = vadd.xlane.f32.xlu0 %v289
  %v291 = vpop.xlane.xlu0 %290
  %v292 = vmul.f32 %v288, %v279
  %v293 = vmul.f32 %v291, %v279
  %v294 = vadd.f32 %v292, 1e-06
  %v295 = vadd.f32 %v293, 1e-06
  %v296 = vrsqrt.pop %v294
  %v297 = vrsqrt.pop %v295
  %v298 = vmul.f32 %v282, %v296
  %v299 = vmul.f32 %v283, %v297
  %v300 = vlaneseq
  %v301 = vshrl.u32 %v300, 7
  %v302 = vsub.s32 0, %v301
  %v303 = vrot.slane %v262, %v302
  %v304 = vmul.f32 %v298, %v303
  %v305 = vmul.f32 %v299, %v303
  %v306 = vlaneseq
  %v307 = vshrl.u32 %v306, 7
  %v308 = vsub.s32 0, %v307
  %v309 = vrot.slane %v263, %v308
  %v310 = vadd.f32 %v304, %v309
  %v311 = vadd.f32 %v305, %v309
  %v312 = vpack.c.bf16 %v311, %v310
  %v313 = vlaneseq
  %v314 = vshrl.u32 %v313, 7
  %v315 = vsub.s32 0, %v314
  %v316 = vrot.slane %v264, %v315
  %v321 = vunpack.c.l.b16 %v226
  %v322 = vunpack.c.l.b16 %v227
  %v323 = vunpack.c.l.b16 %v228
  %v324 = vunpack.c.l.b16 %v229
  %v325 = vpack.c.b16 %v322, %v321
  %v326 = vpack.c.b16 %v324, %v323
  %v330 = vsel %vm272, %v312, 0
  %332 = vmatprep.subr.bf16.mxu0 0
  %333 = vmatpush1.bf16.msra.mxu0 %v325
  %334 = vmatprep.subr.bf16.mxu0 0
  %335 = vmatpush1.bf16.msra.mxu0 %v326
  %336 = vmatprep.subr.bf16.mxu0 0
  %337 = vmatpush1.bf16.msra.mxu0 0
  %338 = vmatprep.subr.bf16.mxu0 0
  %339 = vmatpush1.bf16.msra.mxu0 0
  %340 = vmatprep.subr.bf16.mxu0 0
  %341 = vmatpush1.bf16.msra.mxu0 0
  %342 = vmatprep.subr.bf16.mxu0 0
  %343 = vmatpush1.bf16.msra.mxu0 0
  %344 = vmatprep.subr.bf16.mxu0 0
  %345 = vmatpush1.bf16.msra.mxu0 0
  %346 = vmatprep.subr.bf16.mxu0 0
  %347 = vmatpush1.bf16.msra.mxu0 0
  %348 = vmatprep.subr.bf16.mxu0 0
  %349 = vmatpush1.bf16.msra.mxu0 0
  %350 = vmatprep.subr.bf16.mxu0 0
  %351 = vmatpush1.bf16.msra.mxu0 0
  %352 = vmatprep.subr.bf16.mxu0 0
  %353 = vmatpush1.bf16.msra.mxu0 0
  %354 = vmatprep.subr.bf16.mxu0 0
  %355 = vmatpush1.bf16.msra.mxu0 0
  %356 = vmatprep.subr.bf16.mxu0 0
  %357 = vmatpush1.bf16.msra.mxu0 0
  %358 = vmatprep.subr.bf16.mxu0 0
  %359 = vmatpush1.bf16.msra.mxu0 0
  %360 = vmatprep.subr.bf16.mxu0 0
  %361 = vmatpush1.bf16.msra.mxu0 0
  %362 = vmatprep.subr.bf16.mxu0 0
  %363 = vmatpush1.bf16.msra.mxu0 0
  %364 = vmatprep.mubr.bf16.mxu0 0
  %365 = vmatmul.mubr.bf16.gmra.mrb[0].mxu0 %v330
  %v366 = vpop.f32.mrb[0].mxu0
  %v367 = vadd.f32 %v316, %v366
  %v368 = vpop.f32.mrb[0].mxu0
  %v369 = vpop.f32.mrb[0].mxu0
  %v370 = vadd.f32 %v316, %v369
  %v371 = vpop.f32.mrb[0].mxu0
  %372 = vdwg.mxu0
  %v373 = vlaneseq
  %v374 = vshrl.u32 %v373, 7
  %v375 = vsub.s32 0, %v374
  %v376 = vrot.slane %v265, %v375
  %v381 = vunpack.c.l.b16 %v230
  %v382 = vunpack.c.l.b16 %v231
  %v383 = vunpack.c.l.b16 %v232
  %v384 = vunpack.c.l.b16 %v233
  %v385 = vpack.c.b16 %v382, %v381
  %v386 = vpack.c.b16 %v384, %v383
  %389 = vmatprep.subr.bf16.mxu0 0
  %390 = vmatpush1.bf16.msra.mxu0 %v385
  %391 = vmatprep.subr.bf16.mxu0 0
  %392 = vmatpush1.bf16.msra.mxu0 %v386
  %393 = vmatprep.subr.bf16.mxu0 0
  %394 = vmatpush1.bf16.msra.mxu0 0
  %395 = vmatprep.subr.bf16.mxu0 0
  %396 = vmatpush1.bf16.msra.mxu0 0
  %397 = vmatprep.subr.bf16.mxu0 0
  %398 = vmatpush1.bf16.msra.mxu0 0
  %399 = vmatprep.subr.bf16.mxu0 0
  %400 = vmatpush1.bf16.msra.mxu0 0
  %401 = vmatprep.subr.bf16.mxu0 0
  %402 = vmatpush1.bf16.msra.mxu0 0
  %403 = vmatprep.subr.bf16.mxu0 0
  %404 = vmatpush1.bf16.msra.mxu0 0
  %405 = vmatprep.subr.bf16.mxu0 0
  %406 = vmatpush1.bf16.msra.mxu0 0
  %407 = vmatprep.subr.bf16.mxu0 0
  %408 = vmatpush1.bf16.msra.mxu0 0
  %409 = vmatprep.subr.bf16.mxu0 0
  %410 = vmatpush1.bf16.msra.mxu0 0
  %411 = vmatprep.subr.bf16.mxu0 0
  %412 = vmatpush1.bf16.msra.mxu0 0
  %413 = vmatprep.subr.bf16.mxu0 0
  %414 = vmatpush1.bf16.msra.mxu0 0
  %415 = vmatprep.subr.bf16.mxu0 0
  %416 = vmatpush1.bf16.msra.mxu0 0
  %417 = vmatprep.subr.bf16.mxu0 0
  %418 = vmatpush1.bf16.msra.mxu0 0
  %419 = vmatprep.subr.bf16.mxu0 0
  %420 = vmatpush1.bf16.msra.mxu0 0
  %421 = vmatprep.mubr.bf16.mxu0 0
  %422 = vmatmul.mubr.bf16.gmra.mrb[0].mxu0 %v330
  %v423 = vpop.f32.mrb[0].mxu0
  %v424 = vadd.f32 %v376, %v423
  %v425 = vpop.f32.mrb[0].mxu0
  %v426 = vpop.f32.mrb[0].mxu0
  %v427 = vadd.f32 %v376, %v426
  %v428 = vpop.f32.mrb[0].mxu0
  %429 = vdwg.mxu0
  %v430 = vlaneseq
  %v431 = vshrl.u32 %v430, 7
  %v432 = vsub.s32 0, %v431
  %v433 = vrot.slane %v266, %v432
  %v438 = vunpack.c.l.b16 %v234
  %v439 = vunpack.c.l.b16 %v235
  %v440 = vunpack.c.l.b16 %v236
  %v441 = vunpack.c.l.b16 %v237
  %v442 = vpack.c.b16 %v439, %v438
  %v443 = vpack.c.b16 %v441, %v440
  %446 = vmatprep.subr.bf16.mxu0 0
  %447 = vmatpush1.bf16.msra.mxu0 %v442
  %448 = vmatprep.subr.bf16.mxu0 0
  %449 = vmatpush1.bf16.msra.mxu0 %v443
  %450 = vmatprep.subr.bf16.mxu0 0
  %451 = vmatpush1.bf16.msra.mxu0 0
  %452 = vmatprep.subr.bf16.mxu0 0
  %453 = vmatpush1.bf16.msra.mxu0 0
  %454 = vmatprep.subr.bf16.mxu0 0
  %455 = vmatpush1.bf16.msra.mxu0 0
  %456 = vmatprep.subr.bf16.mxu0 0
  %457 = vmatpush1.bf16.msra.mxu0 0
  %458 = vmatprep.subr.bf16.mxu0 0
  %459 = vmatpush1.bf16.msra.mxu0 0
  %460 = vmatprep.subr.bf16.mxu0 0
  %461 = vmatpush1.bf16.msra.mxu0 0
  %462 = vmatprep.subr.bf16.mxu0 0
  %463 = vmatpush1.bf16.msra.mxu0 0
  %464 = vmatprep.subr.bf16.mxu0 0
  %465 = vmatpush1.bf16.msra.mxu0 0
  %466 = vmatprep.subr.bf16.mxu0 0
  %467 = vmatpush1.bf16.msra.mxu0 0
  %468 = vmatprep.subr.bf16.mxu0 0
  %469 = vmatpush1.bf16.msra.mxu0 0
  %470 = vmatprep.subr.bf16.mxu0 0
  %471 = vmatpush1.bf16.msra.mxu0 0
  %472 = vmatprep.subr.bf16.mxu0 0
  %473 = vmatpush1.bf16.msra.mxu0 0
  %474 = vmatprep.subr.bf16.mxu0 0
  %475 = vmatpush1.bf16.msra.mxu0 0
  %476 = vmatprep.subr.bf16.mxu0 0
  %477 = vmatpush1.bf16.msra.mxu0 0
  %478 = vmatprep.mubr.bf16.mxu0 0
  %479 = vmatmul.mubr.bf16.gmra.mrb[0].mxu0 %v330
  %v480 = vpop.f32.mrb[0].mxu0
  %v481 = vadd.f32 %v433, %v480
  %v482 = vpop.f32.mrb[0].mxu0
  %v483 = vpop.f32.mrb[0].mxu0
  %v484 = vadd.f32 %v433, %v483
  %v485 = vpop.f32.mrb[0].mxu0
  %486 = vdwg.mxu0
  %v487 = vmul.f32 %v367, %v27
  %v488 = vmul.f32 %v370, %v28
  %v489 = vmul.f32 %v367, %v29
  %v490 = vmul.f32 %v370, %v30
  %v491 = vmul.f32 %v367, %v31
  %v492 = vmul.f32 %v370, %v32
  %v493 = vmul.f32 %v367, %v33
  %v494 = vmul.f32 %v370, %v34
  %v495 = vpack.c.bf16 %v488, %v487
  %v496 = vpack.c.bf16 %v490, %v489
  %v497 = vpack.c.bf16 %v492, %v491
  %v498 = vpack.c.bf16 %v494, %v493
  %v499 = vpack.c.bf16 %v427, %v424
  %v501 = vsel %vm272, %v495, 0
  %v504 = vsel %vm272, %v496, 0
  %v507 = vsel %vm272, %v497, 0
  %v510 = vsel %vm272, %v498, 0
  %v513 = vsel %vm272, %v499, 0
  %515 = vmatprep.subr.bf16.mxu0 0
  %516 = vmatpush1.bf16.xpose.msra.mxu0 %v513
  %517 = vmatprep.subr.bf16.mxu0 0
  %518 = vmatpush1.bf16.xpose.msra.mxu0 0
  %519 = vmatprep.subr.bf16.mxu0 0
  %520 = vmatpush1.bf16.xpose.msra.mxu0 0
  %521 = vmatprep.subr.bf16.mxu0 0
  %522 = vmatpush1.bf16.xpose.msra.mxu0 0
  %523 = vmatprep.subr.bf16.mxu0 0
  %524 = vmatpush1.bf16.xpose.msra.mxu0 0
  %525 = vmatprep.subr.bf16.mxu0 0
  %526 = vmatpush1.bf16.xpose.msra.mxu0 0
  %527 = vmatprep.subr.bf16.mxu0 0
  %528 = vmatpush1.bf16.xpose.msra.mxu0 0
  %529 = vmatprep.subr.bf16.mxu0 0
  %530 = vmatpush1.bf16.xpose.msra.mxu0 0
  %531 = vmatprep.subr.bf16.mxu0 0
  %532 = vmatpush1.bf16.xpose.msra.mxu0 0
  %533 = vmatprep.subr.bf16.mxu0 0
  %534 = vmatpush1.bf16.xpose.msra.mxu0 0
  %535 = vmatprep.subr.bf16.mxu0 0
  %536 = vmatpush1.bf16.xpose.msra.mxu0 0
  %537 = vmatprep.subr.bf16.mxu0 0
  %538 = vmatpush1.bf16.xpose.msra.mxu0 0
  %539 = vmatprep.subr.bf16.mxu0 0
  %540 = vmatpush1.bf16.xpose.msra.mxu0 0
  %541 = vmatprep.subr.bf16.mxu0 0
  %542 = vmatpush1.bf16.xpose.msra.mxu0 0
  %543 = vmatprep.subr.bf16.mxu0 0
  %544 = vmatpush1.bf16.xpose.msra.mxu0 0
  %545 = vmatprep.subr.bf16.mxu0 0
  %546 = vmatpush1.bf16.xpose.msra.mxu0 0
  %547 = vmatprep.mubr.bf16.mxu0 0
  %548 = vmatmul.mubr.bf16.gmra.mrb[0].mxu0 %v501
  %v549 = vpop.f32.mrb[0].mxu0
  %v550 = vadd.f32 %v35, %v549
  %v551 = vpop.f32.mrb[0].mxu0
  %v552 = vpop.f32.mrb[0].mxu0
  %v553 = vadd.f32 %v36, %v552
  %v554 = vpop.f32.mrb[0].mxu0
  %555 = vmatprep.mubr.bf16.mxu0 0
  %556 = vmatmul.mubr.bf16.gmra.mrb[0].mxu0 %v504
  %v557 = vpop.f32.mrb[0].mxu0
  %v558 = vadd.f32 %v37, %v557
  %v559 = vpop.f32.mrb[0].mxu0
  %v560 = vpop.f32.mrb[0].mxu0
  %v561 = vadd.f32 %v38, %v560
  %v562 = vpop.f32.mrb[0].mxu0
  %563 = vmatprep.mubr.bf16.mxu0 0
  %564 = vmatmul.mubr.bf16.gmra.mrb[0].mxu0 %v507
  %v565 = vpop.f32.mrb[0].mxu0
  %v566 = vadd.f32 %v39, %v565
  %v567 = vpop.f32.mrb[0].mxu0
  %v568 = vpop.f32.mrb[0].mxu0
  %v569 = vadd.f32 %v40, %v568
  %v570 = vpop.f32.mrb[0].mxu0
  %571 = vmatprep.mubr.bf16.mxu0 0
  %572 = vmatmul.mubr.bf16.gmra.mrb[0].mxu0 %v510
  %v573 = vpop.f32.mrb[0].mxu0
  %v574 = vadd.f32 %v41, %v573
  %v575 = vpop.f32.mrb[0].mxu0
  %v576 = vpop.f32.mrb[0].mxu0
  %v577 = vadd.f32 %v42, %v576
  %v578 = vpop.f32.mrb[0].mxu0
  %579 = vdwg.mxu0
  %vm580 = vcmask 130048
  %v581 = vsel %vm580, %v550, -inf
  %582 = vmax.xlane.f32.xlu0 %v581
  %v583 = vpop.xlane.xlu0 %582
  %v584 = vsel %vm580, %v553, -inf
  %585 = vmax.xlane.f32.xlu0 %v584
  %v586 = vpop.xlane.xlu0 %585
  %v587 = vsel %vm580, %v558, -inf
  %588 = vmax.xlane.f32.xlu0 %v587
  %v589 = vpop.xlane.xlu0 %588
  %v590 = vsel %vm580, %v561, -inf
  %591 = vmax.xlane.f32.xlu0 %v590
  %v592 = vpop.xlane.xlu0 %591
  %v593 = vsel %vm580, %v566, -inf
  %594 = vmax.xlane.f32.xlu0 %v593
  %v595 = vpop.xlane.xlu0 %594
  %v596 = vsel %vm580, %v569, -inf
  %597 = vmax.xlane.f32.xlu0 %v596
  %v598 = vpop.xlane.xlu0 %597
  %v599 = vsel %vm580, %v574, -inf
  %600 = vmax.xlane.f32.xlu0 %v599
  %v601 = vpop.xlane.xlu0 %600
  %v602 = vsel %vm580, %v577, -inf
  %603 = vmax.xlane.f32.xlu0 %v602
  %v604 = vpop.xlane.xlu0 %603
  %v605 = vsub.f32 %v550, %v583
  %v606 = vsub.f32 %v553, %v586
  %v607 = vsub.f32 %v558, %v589
  %v608 = vsub.f32 %v561, %v592
  %v609 = vsub.f32 %v566, %v595
  %v610 = vsub.f32 %v569, %v598
  %v611 = vsub.f32 %v574, %v601
  %v612 = vsub.f32 %v577, %v604
  %v613 = vmul.f32 %v605, 1.442695
  %v614 = vpow.pop %v613
  %v615 = vmul.f32 %v606, 1.442695
  %v616 = vpow.pop %v615
  %v617 = vmul.f32 %v607, 1.442695
  %v618 = vpow.pop %v617
  %v619 = vmul.f32 %v608, 1.442695
  %v620 = vpow.pop %v619
  %v621 = vmul.f32 %v609, 1.442695
  %v622 = vpow.pop %v621
  %v623 = vmul.f32 %v610, 1.442695
  %v624 = vpow.pop %v623
  %v625 = vmul.f32 %v611, 1.442695
  %v626 = vpow.pop %v625
  %v627 = vmul.f32 %v612, 1.442695
  %v628 = vpow.pop %v627
  %v629 = vsel %vm580, %v614, 0.0
  %630 = vadd.xlane.f32.xlu0 %v629
  %v631 = vpop.xlane.xlu0 %630
  %v632 = vsel %vm580, %v616, 0.0
  %633 = vadd.xlane.f32.xlu0 %v632
  %v634 = vpop.xlane.xlu0 %633
  %v635 = vsel %vm580, %v618, 0.0
  %636 = vadd.xlane.f32.xlu0 %v635
  %v637 = vpop.xlane.xlu0 %636
  %v638 = vsel %vm580, %v620, 0.0
  %639 = vadd.xlane.f32.xlu0 %v638
  %v640 = vpop.xlane.xlu0 %639
  %v641 = vsel %vm580, %v622, 0.0
  %642 = vadd.xlane.f32.xlu0 %v641
  %v643 = vpop.xlane.xlu0 %642
  %v644 = vsel %vm580, %v624, 0.0
  %645 = vadd.xlane.f32.xlu0 %v644
  %v646 = vpop.xlane.xlu0 %645
  %v647 = vsel %vm580, %v626, 0.0
  %648 = vadd.xlane.f32.xlu0 %v647
  %v649 = vpop.xlane.xlu0 %648
  %v650 = vsel %vm580, %v628, 0.0
  %651 = vadd.xlane.f32.xlu0 %v650
  %v652 = vpop.xlane.xlu0 %651
  %v653 = vrcp.pop %v631
  %v654 = vrcp.pop %v634
  %v655 = vrcp.pop %v637
  %v656 = vrcp.pop %v640
  %v657 = vrcp.pop %v643
  %v658 = vrcp.pop %v646
  %v659 = vrcp.pop %v649
  %v660 = vrcp.pop %v652
  %v661 = vmul.f32 %v614, %v653
  %v662 = vmul.f32 %v616, %v654
  %v663 = vmul.f32 %v618, %v655
  %v664 = vmul.f32 %v620, %v656
  %v665 = vmul.f32 %v622, %v657
  %v666 = vmul.f32 %v624, %v658
  %v667 = vmul.f32 %v626, %v659
  %v668 = vmul.f32 %v628, %v660
  %v669 = vpack.c.bf16 %v662, %v661
  %v670 = vpack.c.bf16 %v664, %v663
  %v671 = vpack.c.bf16 %v666, %v665
  %v672 = vpack.c.bf16 %v668, %v667
  %v673 = vpack.c.bf16 %v484, %v481
  %v675 = vsel %vm580, %v669, 0
  %v678 = vsel %vm580, %v670, 0
  %v681 = vsel %vm580, %v671, 0
  %v684 = vsel %vm580, %v672, 0
  %686 = vmatprep.subr.bf16.mxu0 0
  %687 = vmatpush1.bf16.msra.mxu0 %v673
  %688 = vmatprep.subr.bf16.mxu0 0
  %689 = vmatpush1.bf16.msra.mxu0 0
  %690 = vmatprep.subr.bf16.mxu0 0
  %691 = vmatpush1.bf16.msra.mxu0 0
  %692 = vmatprep.subr.bf16.mxu0 0
  %693 = vmatpush1.bf16.msra.mxu0 0
  %694 = vmatprep.subr.bf16.mxu0 0
  %695 = vmatpush1.bf16.msra.mxu0 0
  %696 = vmatprep.subr.bf16.mxu0 0
  %697 = vmatpush1.bf16.msra.mxu0 0
  %698 = vmatprep.subr.bf16.mxu0 0
  %699 = vmatpush1.bf16.msra.mxu0 0
  %700 = vmatprep.subr.bf16.mxu0 0
  %701 = vmatpush1.bf16.msra.mxu0 0
  %702 = vmatprep.subr.bf16.mxu0 0
  %703 = vmatpush1.bf16.msra.mxu0 0
  %704 = vmatprep.subr.bf16.mxu0 0
  %705 = vmatpush1.bf16.msra.mxu0 0
  %706 = vmatprep.subr.bf16.mxu0 0
  %707 = vmatpush1.bf16.msra.mxu0 0
  %708 = vmatprep.subr.bf16.mxu0 0
  %709 = vmatpush1.bf16.msra.mxu0 0
  %710 = vmatprep.subr.bf16.mxu0 0
  %711 = vmatpush1.bf16.msra.mxu0 0
  %712 = vmatprep.subr.bf16.mxu0 0
  %713 = vmatpush1.bf16.msra.mxu0 0
  %714 = vmatprep.subr.bf16.mxu0 0
  %715 = vmatpush1.bf16.msra.mxu0 0
  %716 = vmatprep.subr.bf16.mxu0 0
  %717 = vmatpush1.bf16.msra.mxu0 0
  %718 = vmatprep.mubr.bf16.mxu0 0
  %719 = vmatmul.mubr.bf16.gmra.mrb[0].mxu0 %v675
  %v720 = vpop.f32.mrb[0].mxu0
  %v721 = vadd.f32 0.0, %v720
  %v722 = vpop.f32.mrb[0].mxu0
  %v723 = vpop.f32.mrb[0].mxu0
  %v724 = vadd.f32 0.0, %v723
  %v725 = vpop.f32.mrb[0].mxu0
  %726 = vmatprep.mubr.bf16.mxu0 0
  %727 = vmatmul.mubr.bf16.gmra.mrb[0].mxu0 %v678
  %v728 = vpop.f32.mrb[0].mxu0
  %v729 = vadd.f32 0.0, %v728
  %v730 = vpop.f32.mrb[0].mxu0
  %v731 = vpop.f32.mrb[0].mxu0
  %v732 = vadd.f32 0.0, %v731
  %v733 = vpop.f32.mrb[0].mxu0
  %734 = vmatprep.mubr.bf16.mxu0 0
  %735 = vmatmul.mubr.bf16.gmra.mrb[0].mxu0 %v681
  %v736 = vpop.f32.mrb[0].mxu0
  %v737 = vadd.f32 0.0, %v736
  %v738 = vpop.f32.mrb[0].mxu0
  %v739 = vpop.f32.mrb[0].mxu0
  %v740 = vadd.f32 0.0, %v739
  %v741 = vpop.f32.mrb[0].mxu0
  %742 = vmatprep.mubr.bf16.mxu0 0
  %743 = vmatmul.mubr.bf16.gmra.mrb[0].mxu0 %v684
  %v744 = vpop.f32.mrb[0].mxu0
  %v745 = vadd.f32 0.0, %v744
  %v746 = vpop.f32.mrb[0].mxu0
  %v747 = vpop.f32.mrb[0].mxu0
  %v748 = vadd.f32 0.0, %v747
  %v749 = vpop.f32.mrb[0].mxu0
  %750 = vdwg.mxu0
  %v751 = vmul.f32 %v721, %v27
  %v752 = vmul.f32 %v724, %v28
  %v753 = vmul.f32 %v729, %v29
  %v754 = vmul.f32 %v732, %v30
  %v755 = vmul.f32 %v737, %v31
  %v756 = vmul.f32 %v740, %v32
  %v757 = vmul.f32 %v745, %v33
  %v758 = vmul.f32 %v748, %v34
  %v759 = vadd.f32 %v751, %v753
  %v760 = vadd.f32 %v752, %v754
  %v761 = vadd.f32 %v759, %v755
  %v762 = vadd.f32 %v760, %v756
  %v763 = vadd.f32 %v761, %v757
  %v764 = vadd.f32 %v762, %v758
  %v765 = vpack.c.bf16 %v764, %v763
  %v770 = vunpack.c.l.b16 %v238
  %v771 = vunpack.c.l.b16 %v239
  %v772 = vunpack.c.l.b16 %v240
  %v773 = vunpack.c.l.b16 %v241
  %v774 = vpack.c.b16 %v771, %v770
  %v775 = vpack.c.b16 %v773, %v772
  %v779 = vsel %vm272, %v765, 0
  %781 = vmatprep.subr.bf16.mxu0 0
  %782 = vmatpush1.bf16.msra.mxu0 %v774
  %783 = vmatprep.subr.bf16.mxu0 0
  %784 = vmatpush1.bf16.msra.mxu0 %v775
  %785 = vmatprep.subr.bf16.mxu0 0
  %786 = vmatpush1.bf16.msra.mxu0 0
  %787 = vmatprep.subr.bf16.mxu0 0
  %788 = vmatpush1.bf16.msra.mxu0 0
  %789 = vmatprep.subr.bf16.mxu0 0
  %790 = vmatpush1.bf16.msra.mxu0 0
  %791 = vmatprep.subr.bf16.mxu0 0
  %792 = vmatpush1.bf16.msra.mxu0 0
  %793 = vmatprep.subr.bf16.mxu0 0
  %794 = vmatpush1.bf16.msra.mxu0 0
  %795 = vmatprep.subr.bf16.mxu0 0
  %796 = vmatpush1.bf16.msra.mxu0 0
  %797 = vmatprep.subr.bf16.mxu0 0
  %798 = vmatpush1.bf16.msra.mxu0 0
  %799 = vmatprep.subr.bf16.mxu0 0
  %800 = vmatpush1.bf16.msra.mxu0 0
  %801 = vmatprep.subr.bf16.mxu0 0
  %802 = vmatpush1.bf16.msra.mxu0 0
  %803 = vmatprep.subr.bf16.mxu0 0
  %804 = vmatpush1.bf16.msra.mxu0 0
  %805 = vmatprep.subr.bf16.mxu0 0
  %806 = vmatpush1.bf16.msra.mxu0 0
  %807 = vmatprep.subr.bf16.mxu0 0
  %808 = vmatpush1.bf16.msra.mxu0 0
  %809 = vmatprep.subr.bf16.mxu0 0
  %810 = vmatpush1.bf16.msra.mxu0 0
  %811 = vmatprep.subr.bf16.mxu0 0
  %812 = vmatpush1.bf16.msra.mxu0 0
  %813 = vmatprep.mubr.bf16.mxu0 0
  %814 = vmatmul.mubr.bf16.gmra.mrb[0].mxu0 %v779
  %v815 = vpop.f32.mrb[0].mxu0
  %v816 = vadd.f32 0.0, %v815
  %v817 = vpop.f32.mrb[0].mxu0
  %v818 = vpop.f32.mrb[0].mxu0
  %v819 = vadd.f32 0.0, %v818
  %v820 = vpop.f32.mrb[0].mxu0
  %821 = vdwg.mxu0
  %v822 = vadd.f32 %v220, %v816
  %v823 = vadd.f32 %v223, %v819
  %v824 = vlaneseq
  %v825 = vshrl.u32 %v824, 7
  %v826 = vsub.s32 0, %v825
  %v827 = vrot.slane %v267, %v826
  %v828 = vadd.f32 %v822, %v827
  %v829 = vadd.f32 %v823, %v827
  %v830 = vsel %vm272, %v828, 0.0
  %831 = vadd.xlane.f32.xlu0 %v830
  %v832 = vpop.xlane.xlu0 %831
  %v833 = vsel %vm272, %v829, 0.0
  %834 = vadd.xlane.f32.xlu0 %v833
  %v835 = vpop.xlane.xlu0 %834
  %v836 = vmul.f32 %v832, %v279
  %v837 = vmul.f32 %v835, %v279
  %v838 = vsub.f32 %v828, %v836
  %v839 = vsub.f32 %v829, %v837
  %v840 = vmul.f32 %v838, %v838
  %v841 = vmul.f32 %v839, %v839
  %v842 = vsel %vm272, %v840, 0.0
  %843 = vadd.xlane.f32.xlu0 %v842
  %v844 = vpop.xlane.xlu0 %843
  %v845 = vsel %vm272, %v841, 0.0
  %846 = vadd.xlane.f32.xlu0 %v845
  %v847 = vpop.xlane.xlu0 %846
  %v848 = vmul.f32 %v844, %v279
  %v849 = vmul.f32 %v847, %v279
  %v850 = vadd.f32 %v848, 1e-06
  %v851 = vadd.f32 %v849, 1e-06
  %v852 = vrsqrt.pop %v850
  %v853 = vrsqrt.pop %v851
  %v854 = vmul.f32 %v838, %v852
  %v855 = vmul.f32 %v839, %v853
  %v856 = vlaneseq
  %v857 = vshrl.u32 %v856, 7
  %v858 = vsub.s32 0, %v857
  %v859 = vrot.slane %v268, %v858
  %v860 = vmul.f32 %v854, %v859
  %v861 = vmul.f32 %v855, %v859
  %v862 = vlaneseq
  %v863 = vshrl.u32 %v862, 7
  %v864 = vsub.s32 0, %v863
  %v865 = vrot.slane %v269, %v864
  %v866 = vadd.f32 %v860, %v865
  %v867 = vadd.f32 %v861, %v865
  %v868 = vpack.c.bf16 %v867, %v866
  %v869 = vlaneseq
  %v870 = vshrl.u32 %v869, 7
  %v871 = vsub.s32 0, %v870
  %v872 = vrot.slane %v270, %v871
  %v877 = vunpack.c.l.b16 %v258
  %v878 = vunpack.c.l.b16 %v259
  %v879 = vunpack.c.l.b16 %v260
  %v880 = vunpack.c.l.b16 %v261
  %v881 = vpack.c.b16 %v878, %v877
  %v882 = vpack.c.b16 %v880, %v879
  %v886 = vsel %vm272, %v868, 0
  %888 = vmatprep.subr.bf16.mxu0 0
  %889 = vmatpush1.bf16.msra.mxu0 %v881
  %890 = vmatprep.subr.bf16.mxu0 0
  %891 = vmatpush1.bf16.msra.mxu0 %v882
  %892 = vmatprep.subr.bf16.mxu0 0
  %893 = vmatpush1.bf16.msra.mxu0 0
  %894 = vmatprep.subr.bf16.mxu0 0
  %895 = vmatpush1.bf16.msra.mxu0 0
  %896 = vmatprep.subr.bf16.mxu0 0
  %897 = vmatpush1.bf16.msra.mxu0 0
  %898 = vmatprep.subr.bf16.mxu0 0
  %899 = vmatpush1.bf16.msra.mxu0 0
  %900 = vmatprep.subr.bf16.mxu0 0
  %901 = vmatpush1.bf16.msra.mxu0 0
  %902 = vmatprep.subr.bf16.mxu0 0
  %903 = vmatpush1.bf16.msra.mxu0 0
  %904 = vmatprep.subr.bf16.mxu0 0
  %905 = vmatpush1.bf16.msra.mxu0 0
  %906 = vmatprep.subr.bf16.mxu0 0
  %907 = vmatpush1.bf16.msra.mxu0 0
  %908 = vmatprep.subr.bf16.mxu0 0
  %909 = vmatpush1.bf16.msra.mxu0 0
  %910 = vmatprep.subr.bf16.mxu0 0
  %911 = vmatpush1.bf16.msra.mxu0 0
  %912 = vmatprep.subr.bf16.mxu0 0
  %913 = vmatpush1.bf16.msra.mxu0 0
  %914 = vmatprep.subr.bf16.mxu0 0
  %915 = vmatpush1.bf16.msra.mxu0 0
  %916 = vmatprep.subr.bf16.mxu0 0
  %917 = vmatpush1.bf16.msra.mxu0 0
  %918 = vmatprep.subr.bf16.mxu0 0
  %919 = vmatpush1.bf16.msra.mxu0 0
  %920 = vmatprep.mubr.bf16.mxu0 0
  %921 = vmatmul.mubr.bf16.gmra.mrb[0].mxu0 %v886
  %v922 = vpop.f32.mrb[0].mxu0
  %v923 = vadd.f32 %v872, %v922
  %v924 = vpop.f32.mrb[0].mxu0
  %v925 = vpop.f32.mrb[0].mxu0
  %v926 = vadd.f32 %v872, %v925
  %v927 = vpop.f32.mrb[0].mxu0
  %928 = vdwg.mxu0
  %v929 = vmul.f32 %v923, 0.5
  %v930 = vmul.f32 %v926, 0.5
  %v931 = vmul.f32 %v923, 0.70710677
  %v932 = vmul.f32 %v926, 0.70710677
  %vm933 = vcmp.ge.f32.partialorder %v931, 0.0
  %vm934 = vcmp.ge.f32.partialorder %v932, 0.0
  %v935 = vsel %vm933, 1.0, -1.0
  %v936 = vsel %vm934, 1.0, -1.0
  %v937 = vand.u32 2147483647, %v931
  %v938 = vand.u32 2147483647, %v932
  %v939 = vmul.f32 %v937, 0.3275911
  %v940 = vmul.f32 %v938, 0.3275911
  %v941 = vadd.f32 %v939, 1.0
  %v942 = vadd.f32 %v940, 1.0
  %v943 = vrcp.pop %v941
  %v944 = vmul.f32 1.0, %v943
  %v945 = vrcp.pop %v942
  %v946 = vmul.f32 1.0, %v945
  %v947 = vmul.f32 %v944, 1.0614054
  %v948 = vmul.f32 %v946, 1.0614054
  %v949 = vadd.f32 %v947, -1.4531521
  %v950 = vadd.f32 %v948, -1.4531521
  %v951 = vmul.f32 %v949, %v944
  %v952 = vmul.f32 %v950, %v946
  %v953 = vadd.f32 %v951, 1.4214138
  %v954 = vadd.f32 %v952, 1.4214138
  %v955 = vmul.f32 %v953, %v944
  %v956 = vmul.f32 %v954, %v946
  %v957 = vadd.f32 %v955, -0.28449672
  %v958 = vadd.f32 %v956, -0.28449672
  %v959 = vmul.f32 %v957, %v944
  %v960 = vmul.f32 %v958, %v946
  %v961 = vadd.f32 %v959, 0.2548296
  %v962 = vadd.f32 %v960, 0.2548296
  %v963 = vmul.f32 %v961, %v944
  %v964 = vmul.f32 %v962, %v946
  %v965 = vsub.f32 0.0, %v937
  %v966 = vsub.f32 0.0, %v938
  %v967 = vmul.f32 %v965, %v937
  %v968 = vmul.f32 %v966, %v938
  %v969 = vmul.f32 %v967, 1.442695
  %v970 = vpow.pop %v969
  %v971 = vmul.f32 %v968, 1.442695
  %v972 = vpow.pop %v971
  %v973 = vmul.f32 %v963, %v970
  %v974 = vmul.f32 %v964, %v972
  %v975 = vsub.f32 1.0, %v973
  %v976 = vsub.f32 1.0, %v974
  %v977 = vmul.f32 %v935, %v975
  %v978 = vmul.f32 %v936, %v976
  %v979 = vadd.f32 %v977, 1.0
  %v980 = vadd.f32 %v978, 1.0
  %v981 = vmul.f32 %v929, %v979
  %v982 = vmul.f32 %v930, %v980
  %v983 = vpack.c.bf16 %v982, %v981
  %v1000 = vunpack.c.l.b16 %v242
  %v1001 = vunpack.c.l.b16 %v243
  %v1002 = vunpack.c.l.b16 %v244
  %v1003 = vunpack.c.l.b16 %v245
  %v1004 = vunpack.c.l.b16 %v246
  %v1005 = vunpack.c.l.b16 %v247
  %v1006 = vunpack.c.l.b16 %v248
  %v1007 = vunpack.c.l.b16 %v249
  %v1008 = vunpack.c.l.b16 %v250
  %v1009 = vunpack.c.l.b16 %v251
  %v1010 = vunpack.c.l.b16 %v252
  %v1011 = vunpack.c.l.b16 %v253
  %v1012 = vunpack.c.l.b16 %v254
  %v1013 = vunpack.c.l.b16 %v255
  %v1014 = vunpack.c.l.b16 %v256
  %v1015 = vunpack.c.l.b16 %v257
  %v1016 = vpack.c.b16 %v1001, %v1000
  %v1017 = vpack.c.b16 %v1003, %v1002
  %v1018 = vpack.c.b16 %v1005, %v1004
  %v1019 = vpack.c.b16 %v1007, %v1006
  %v1020 = vpack.c.b16 %v1009, %v1008
  %v1021 = vpack.c.b16 %v1011, %v1010
  %v1022 = vpack.c.b16 %v1013, %v1012
  %v1023 = vpack.c.b16 %v1015, %v1014
  %1032 = vmatprep.subr.bf16.mxu0 0
  %1033 = vmatpush1.bf16.msra.mxu0 %v1016
  %1034 = vmatprep.subr.bf16.mxu0 0
  %1035 = vmatpush1.bf16.msra.mxu0 %v1017
  %1036 = vmatprep.subr.bf16.mxu0 0
  %1037 = vmatpush1.bf16.msra.mxu0 %v1018
  %1038 = vmatprep.subr.bf16.mxu0 0
  %1039 = vmatpush1.bf16.msra.mxu0 %v1019
  %1040 = vmatprep.subr.bf16.mxu0 0
  %1041 = vmatpush1.bf16.msra.mxu0 %v1020
  %1042 = vmatprep.subr.bf16.mxu0 0
  %1043 = vmatpush1.bf16.msra.mxu0 %v1021
  %1044 = vmatprep.subr.bf16.mxu0 0
  %1045 = vmatpush1.bf16.msra.mxu0 %v1022
  %1046 = vmatprep.subr.bf16.mxu0 0
  %1047 = vmatpush1.bf16.msra.mxu0 %v1023
  %1048 = vmatprep.subr.bf16.mxu0 0
  %1049 = vmatpush1.bf16.msra.mxu0 0
  %1050 = vmatprep.subr.bf16.mxu0 0
  %1051 = vmatpush1.bf16.msra.mxu0 0
  %1052 = vmatprep.subr.bf16.mxu0 0
  %1053 = vmatpush1.bf16.msra.mxu0 0
  %1054 = vmatprep.subr.bf16.mxu0 0
  %1055 = vmatpush1.bf16.msra.mxu0 0
  %1056 = vmatprep.subr.bf16.mxu0 0
  %1057 = vmatpush1.bf16.msra.mxu0 0
  %1058 = vmatprep.subr.bf16.mxu0 0
  %1059 = vmatpush1.bf16.msra.mxu0 0
  %1060 = vmatprep.subr.bf16.mxu0 0
  %1061 = vmatpush1.bf16.msra.mxu0 0
  %1062 = vmatprep.subr.bf16.mxu0 0
  %1063 = vmatpush1.bf16.msra.mxu0 0
  %1064 = vmatprep.mubr.bf16.mxu0 0
  %1065 = vmatmul.mubr.bf16.gmra.mrb[0].mxu0 %v983
  %v1066 = vpop.f32.mrb[0].mxu0
  %v1067 = vadd.f32 0.0, %v1066
  %v1068 = vpop.f32.mrb[0].mxu0
  %v1069 = vpop.f32.mrb[0].mxu0
  %v1070 = vadd.f32 0.0, %v1069
  %v1071 = vpop.f32.mrb[0].mxu0
  %1072 = vdwg.mxu0
  %v1073 = vadd.f32 %v828, %v1067
  %v1074 = vadd.f32 %v829, %v1070
  %v1075 = vlaneseq
  %v1076 = vshrl.u32 %v1075, 7
  %v1077 = vsub.s32 0, %v1076
  %v1078 = vrot.slane %v271, %v1077
  %v1079 = vadd.f32 %v1073, %v1078
  %v1080 = vadd.f32 %v1074, %v1078
  %v1081 = vld [vmem:[%s4 + $0x100] sm:$0xf]
  %v1082 = vld [vmem:[%s4 + $0x104] sm:$0xf]
  %v1083 = vld [vmem:[%s4 + $0x108] sm:$0xf]
  %v1084 = vld [vmem:[%s4 + $0x10c] sm:$0xf]
  %v1085 = vld [vmem:[%s4 + $0x110] sm:$0xf]
  %v1086 = vld [vmem:[%s4 + $0x114] sm:$0xf]
  %v1087 = vld [vmem:[%s4 + $0x118] sm:$0xf]
  %v1088 = vld [vmem:[%s4 + $0x11c] sm:$0xf]
  %v1089 = vld [vmem:[%s4 + $0x120] sm:$0xf]
  %v1090 = vld [vmem:[%s4 + $0x124] sm:$0xf]
  %v1091 = vld [vmem:[%s4 + $0x128] sm:$0xf]
  %v1092 = vld [vmem:[%s4 + $0x12c] sm:$0xf]
  %v1093 = vld [vmem:[%s4 + $0x130] sm:$0xf]
  %v1094 = vld [vmem:[%s4 + $0x134] sm:$0xf]
  %v1095 = vld [vmem:[%s4 + $0x138] sm:$0xf]
  %v1096 = vld [vmem:[%s4 + $0x13c] sm:$0xf]
  %v1097 = vld [vmem:[%s4 + $0x140] sm:$0xf]
  %v1098 = vld [vmem:[%s4 + $0x144] sm:$0xf]
  %v1099 = vld [vmem:[%s4 + $0x148] sm:$0xf]
  %v1100 = vld [vmem:[%s4 + $0x14c] sm:$0xf]
  %v1101 = vld [vmem:[%s4 + $0x150] sm:$0xf]
  %v1102 = vld [vmem:[%s4 + $0x154] sm:$0xf]
  %v1103 = vld [vmem:[%s4 + $0x158] sm:$0xf]
  %v1104 = vld [vmem:[%s4 + $0x15c] sm:$0xf]
  %v1105 = vld [vmem:[%s4 + $0x160] sm:$0xf]
  %v1106 = vld [vmem:[%s4 + $0x164] sm:$0xf]
  %v1107 = vld [vmem:[%s4 + $0x168] sm:$0xf]
  %v1108 = vld [vmem:[%s4 + $0x16c] sm:$0xf]
  %v1109 = vld [vmem:[%s4 + $0x170] sm:$0xf]
  %v1110 = vld [vmem:[%s4 + $0x174] sm:$0xf]
  %v1111 = vld [vmem:[%s4 + $0x178] sm:$0xf]
  %v1112 = vld [vmem:[%s4 + $0x17c] sm:$0xf]
  %v1113 = vld [vmem:[%s5 + $0x10] sm:$0xf]
  %v1114 = vld [vmem:[%s5 + $0x14] sm:$0xf]
  %v1115 = vld [vmem:[%s5 + $0x18] sm:$0xf]
  %v1116 = vld [vmem:[%s5 + $0x1c] sm:$0xf]
  %v1117 = vld [vmem:[%s6 + $0xa] sm:$0x1]
  %v1118 = vld [vmem:[%s6 + $0xb] sm:$0x1]
  %v1119 = vld [vmem:[%s6 + $0xc] sm:$0x1]
  %v1120 = vld [vmem:[%s6 + $0xd] sm:$0x1]
  %v1121 = vld [vmem:[%s6 + $0xe] sm:$0x1]
  %v1122 = vld [vmem:[%s6 + $0xf] sm:$0x1]
  %v1123 = vld [vmem:[%s6 + $0x10] sm:$0x1]
  %v1124 = vld [vmem:[%s6 + $0x11] sm:$0x1]
  %v1125 = vld [vmem:[%s6 + $0x12] sm:$0x1]
  %v1126 = vld [vmem:[%s6 + $0x13] sm:$0x1]
  %v1127 = vsel %vm272, %v1079, 0.0
  %1128 = vadd.xlane.f32.xlu0 %v1127
  %v1129 = vpop.xlane.xlu0 %1128
  %v1130 = vsel %vm272, %v1080, 0.0
  %1131 = vadd.xlane.f32.xlu0 %v1130
  %v1132 = vpop.xlane.xlu0 %1131
  %v1133 = vmul.f32 %v1129, %v279
  %v1134 = vmul.f32 %v1132, %v279
  %v1135 = vsub.f32 %v1079, %v1133
  %v1136 = vsub.f32 %v1080, %v1134
  %v1137 = vmul.f32 %v1135, %v1135
  %v1138 = vmul.f32 %v1136, %v1136
  %v1139 = vsel %vm272, %v1137, 0.0
  %1140 = vadd.xlane.f32.xlu0 %v1139
  %v1141 = vpop.xlane.xlu0 %1140
  %v1142 = vsel %vm272, %v1138, 0.0
  %1143 = vadd.xlane.f32.xlu0 %v1142
  %v1144 = vpop.xlane.xlu0 %1143
  %v1145 = vmul.f32 %v1141, %v279
  %v1146 = vmul.f32 %v1144, %v279
  %v1147 = vadd.f32 %v1145, 1e-06
  %v1148 = vadd.f32 %v1146, 1e-06
  %v1149 = vrsqrt.pop %v1147
  %v1150 = vrsqrt.pop %v1148
  %v1151 = vmul.f32 %v1135, %v1149
  %v1152 = vmul.f32 %v1136, %v1150
  %v1153 = vlaneseq
  %v1154 = vshrl.u32 %v1153, 7
  %v1155 = vsub.s32 0, %v1154
  %v1156 = vrot.slane %v1117, %v1155
  %v1157 = vmul.f32 %v1151, %v1156
  %v1158 = vmul.f32 %v1152, %v1156
  %v1159 = vlaneseq
  %v1160 = vshrl.u32 %v1159, 7
  %v1161 = vsub.s32 0, %v1160
  %v1162 = vrot.slane %v1118, %v1161
  %v1163 = vadd.f32 %v1157, %v1162
  %v1164 = vadd.f32 %v1158, %v1162
  %v1165 = vpack.c.bf16 %v1164, %v1163
  %v1166 = vlaneseq
  %v1167 = vshrl.u32 %v1166, 7
  %v1168 = vsub.s32 0, %v1167
  %v1169 = vrot.slane %v1119, %v1168
  %v1174 = vunpack.c.l.b16 %v1081
  %v1175 = vunpack.c.l.b16 %v1082
  %v1176 = vunpack.c.l.b16 %v1083
  %v1177 = vunpack.c.l.b16 %v1084
  %v1178 = vpack.c.b16 %v1175, %v1174
  %v1179 = vpack.c.b16 %v1177, %v1176
  %v1183 = vsel %vm272, %v1165, 0
  %1185 = vmatprep.subr.bf16.mxu0 0
  %1186 = vmatpush1.bf16.msra.mxu0 %v1178
  %1187 = vmatprep.subr.bf16.mxu0 0
  %1188 = vmatpush1.bf16.msra.mxu0 %v1179
  %1189 = vmatprep.subr.bf16.mxu0 0
  %1190 = vmatpush1.bf16.msra.mxu0 0
  %1191 = vmatprep.subr.bf16.mxu0 0
  %1192 = vmatpush1.bf16.msra.mxu0 0
  %1193 = vmatprep.subr.bf16.mxu0 0
  %1194 = vmatpush1.bf16.msra.mxu0 0
  %1195 = vmatprep.subr.bf16.mxu0 0
  %1196 = vmatpush1.bf16.msra.mxu0 0
  %1197 = vmatprep.subr.bf16.mxu0 0
  %1198 = vmatpush1.bf16.msra.mxu0 0
  %1199 = vmatprep.subr.bf16.mxu0 0
  %1200 = vmatpush1.bf16.msra.mxu0 0
  %1201 = vmatprep.subr.bf16.mxu0 0
  %1202 = vmatpush1.bf16.msra.mxu0 0
  %1203 = vmatprep.subr.bf16.mxu0 0
  %1204 = vmatpush1.bf16.msra.mxu0 0
  %1205 = vmatprep.subr.bf16.mxu0 0
  %1206 = vmatpush1.bf16.msra.mxu0 0
  %1207 = vmatprep.subr.bf16.mxu0 0
  %1208 = vmatpush1.bf16.msra.mxu0 0
  %1209 = vmatprep.subr.bf16.mxu0 0
  %1210 = vmatpush1.bf16.msra.mxu0 0
  %1211 = vmatprep.subr.bf16.mxu0 0
  %1212 = vmatpush1.bf16.msra.mxu0 0
  %1213 = vmatprep.subr.bf16.mxu0 0
  %1214 = vmatpush1.bf16.msra.mxu0 0
  %1215 = vmatprep.subr.bf16.mxu0 0
  %1216 = vmatpush1.bf16.msra.mxu0 0
  %1217 = vmatprep.mubr.bf16.mxu0 0
  %1218 = vmatmul.mubr.bf16.gmra.mrb[0].mxu0 %v1183
  %v1219 = vpop.f32.mrb[0].mxu0
  %v1220 = vadd.f32 %v1169, %v1219
  %v1221 = vpop.f32.mrb[0].mxu0
  %v1222 = vpop.f32.mrb[0].mxu0
  %v1223 = vadd.f32 %v1169, %v1222
  %v1224 = vpop.f32.mrb[0].mxu0
  %1225 = vdwg.mxu0
  %v1226 = vlaneseq
  %v1227 = vshrl.u32 %v1226, 7
  %v1228 = vsub.s32 0, %v1227
  %v1229 = vrot.slane %v1120, %v1228
  %v1234 = vunpack.c.l.b16 %v1085
  %v1235 = vunpack.c.l.b16 %v1086
  %v1236 = vunpack.c.l.b16 %v1087
  %v1237 = vunpack.c.l.b16 %v1088
  %v1238 = vpack.c.b16 %v1235, %v1234
  %v1239 = vpack.c.b16 %v1237, %v1236
  %1242 = vmatprep.subr.bf16.mxu0 0
  %1243 = vmatpush1.bf16.msra.mxu0 %v1238
  %1244 = vmatprep.subr.bf16.mxu0 0
  %1245 = vmatpush1.bf16.msra.mxu0 %v1239
  %1246 = vmatprep.subr.bf16.mxu0 0
  %1247 = vmatpush1.bf16.msra.mxu0 0
  %1248 = vmatprep.subr.bf16.mxu0 0
  %1249 = vmatpush1.bf16.msra.mxu0 0
  %1250 = vmatprep.subr.bf16.mxu0 0
  %1251 = vmatpush1.bf16.msra.mxu0 0
  %1252 = vmatprep.subr.bf16.mxu0 0
  %1253 = vmatpush1.bf16.msra.mxu0 0
  %1254 = vmatprep.subr.bf16.mxu0 0
  %1255 = vmatpush1.bf16.msra.mxu0 0
  %1256 = vmatprep.subr.bf16.mxu0 0
  %1257 = vmatpush1.bf16.msra.mxu0 0
  %1258 = vmatprep.subr.bf16.mxu0 0
  %1259 = vmatpush1.bf16.msra.mxu0 0
  %1260 = vmatprep.subr.bf16.mxu0 0
  %1261 = vmatpush1.bf16.msra.mxu0 0
  %1262 = vmatprep.subr.bf16.mxu0 0
  %1263 = vmatpush1.bf16.msra.mxu0 0
  %1264 = vmatprep.subr.bf16.mxu0 0
  %1265 = vmatpush1.bf16.msra.mxu0 0
  %1266 = vmatprep.subr.bf16.mxu0 0
  %1267 = vmatpush1.bf16.msra.mxu0 0
  %1268 = vmatprep.subr.bf16.mxu0 0
  %1269 = vmatpush1.bf16.msra.mxu0 0
  %1270 = vmatprep.subr.bf16.mxu0 0
  %1271 = vmatpush1.bf16.msra.mxu0 0
  %1272 = vmatprep.subr.bf16.mxu0 0
  %1273 = vmatpush1.bf16.msra.mxu0 0
  %1274 = vmatprep.mubr.bf16.mxu0 0
  %1275 = vmatmul.mubr.bf16.gmra.mrb[0].mxu0 %v1183
  %v1276 = vpop.f32.mrb[0].mxu0
  %v1277 = vadd.f32 %v1229, %v1276
  %v1278 = vpop.f32.mrb[0].mxu0
  %v1279 = vpop.f32.mrb[0].mxu0
  %v1280 = vadd.f32 %v1229, %v1279
  %v1281 = vpop.f32.mrb[0].mxu0
  %1282 = vdwg.mxu0
  %v1283 = vlaneseq
  %v1284 = vshrl.u32 %v1283, 7
  %v1285 = vsub.s32 0, %v1284
  %v1286 = vrot.slane %v1121, %v1285
  %v1291 = vunpack.c.l.b16 %v1089
  %v1292 = vunpack.c.l.b16 %v1090
  %v1293 = vunpack.c.l.b16 %v1091
  %v1294 = vunpack.c.l.b16 %v1092
  %v1295 = vpack.c.b16 %v1292, %v1291
  %v1296 = vpack.c.b16 %v1294, %v1293
  %1299 = vmatprep.subr.bf16.mxu0 0
  %1300 = vmatpush1.bf16.msra.mxu0 %v1295
  %1301 = vmatprep.subr.bf16.mxu0 0
  %1302 = vmatpush1.bf16.msra.mxu0 %v1296
  %1303 = vmatprep.subr.bf16.mxu0 0
  %1304 = vmatpush1.bf16.msra.mxu0 0
  %1305 = vmatprep.subr.bf16.mxu0 0
  %1306 = vmatpush1.bf16.msra.mxu0 0
  %1307 = vmatprep.subr.bf16.mxu0 0
  %1308 = vmatpush1.bf16.msra.mxu0 0
  %1309 = vmatprep.subr.bf16.mxu0 0
  %1310 = vmatpush1.bf16.msra.mxu0 0
  %1311 = vmatprep.subr.bf16.mxu0 0
  %1312 = vmatpush1.bf16.msra.mxu0 0
  %1313 = vmatprep.subr.bf16.mxu0 0
  %1314 = vmatpush1.bf16.msra.mxu0 0
  %1315 = vmatprep.subr.bf16.mxu0 0
  %1316 = vmatpush1.bf16.msra.mxu0 0
  %1317 = vmatprep.subr.bf16.mxu0 0
  %1318 = vmatpush1.bf16.msra.mxu0 0
  %1319 = vmatprep.subr.bf16.mxu0 0
  %1320 = vmatpush1.bf16.msra.mxu0 0
  %1321 = vmatprep.subr.bf16.mxu0 0
  %1322 = vmatpush1.bf16.msra.mxu0 0
  %1323 = vmatprep.subr.bf16.mxu0 0
  %1324 = vmatpush1.bf16.msra.mxu0 0
  %1325 = vmatprep.subr.bf16.mxu0 0
  %1326 = vmatpush1.bf16.msra.mxu0 0
  %1327 = vmatprep.subr.bf16.mxu0 0
  %1328 = vmatpush1.bf16.msra.mxu0 0
  %1329 = vmatprep.subr.bf16.mxu0 0
  %1330 = vmatpush1.bf16.msra.mxu0 0
  %1331 = vmatprep.mubr.bf16.mxu0 0
  %1332 = vmatmul.mubr.bf16.gmra.mrb[0].mxu0 %v1183
  %v1333 = vpop.f32.mrb[0].mxu0
  %v1334 = vadd.f32 %v1286, %v1333
  %v1335 = vpop.f32.mrb[0].mxu0
  %v1336 = vpop.f32.mrb[0].mxu0
  %v1337 = vadd.f32 %v1286, %v1336
  %v1338 = vpop.f32.mrb[0].mxu0
  %1339 = vdwg.mxu0
  %v1340 = vmul.f32 %v1220, %v27
  %v1341 = vmul.f32 %v1223, %v28
  %v1342 = vmul.f32 %v1220, %v29
  %v1343 = vmul.f32 %v1223, %v30
  %v1344 = vmul.f32 %v1220, %v31
  %v1345 = vmul.f32 %v1223, %v32
  %v1346 = vmul.f32 %v1220, %v33
  %v1347 = vmul.f32 %v1223, %v34
  %v1348 = vpack.c.bf16 %v1341, %v1340
  %v1349 = vpack.c.bf16 %v1343, %v1342
  %v1350 = vpack.c.bf16 %v1345, %v1344
  %v1351 = vpack.c.bf16 %v1347, %v1346
  %v1352 = vpack.c.bf16 %v1280, %v1277
  %v1354 = vsel %vm272, %v1348, 0
  %v1357 = vsel %vm272, %v1349, 0
  %v1360 = vsel %vm272, %v1350, 0
  %v1363 = vsel %vm272, %v1351, 0
  %v1366 = vsel %vm272, %v1352, 0
  %1368 = vmatprep.subr.bf16.mxu0 0
  %1369 = vmatpush1.bf16.xpose.msra.mxu0 %v1366
  %1370 = vmatprep.subr.bf16.mxu0 0
  %1371 = vmatpush1.bf16.xpose.msra.mxu0 0
  %1372 = vmatprep.subr.bf16.mxu0 0
  %1373 = vmatpush1.bf16.xpose.msra.mxu0 0
  %1374 = vmatprep.subr.bf16.mxu0 0
  %1375 = vmatpush1.bf16.xpose.msra.mxu0 0
  %1376 = vmatprep.subr.bf16.mxu0 0
  %1377 = vmatpush1.bf16.xpose.msra.mxu0 0
  %1378 = vmatprep.subr.bf16.mxu0 0
  %1379 = vmatpush1.bf16.xpose.msra.mxu0 0
  %1380 = vmatprep.subr.bf16.mxu0 0
  %1381 = vmatpush1.bf16.xpose.msra.mxu0 0
  %1382 = vmatprep.subr.bf16.mxu0 0
  %1383 = vmatpush1.bf16.xpose.msra.mxu0 0
  %1384 = vmatprep.subr.bf16.mxu0 0
  %1385 = vmatpush1.bf16.xpose.msra.mxu0 0
  %1386 = vmatprep.subr.bf16.mxu0 0
  %1387 = vmatpush1.bf16.xpose.msra.mxu0 0
  %1388 = vmatprep.subr.bf16.mxu0 0
  %1389 = vmatpush1.bf16.xpose.msra.mxu0 0
  %1390 = vmatprep.subr.bf16.mxu0 0
  %1391 = vmatpush1.bf16.xpose.msra.mxu0 0
  %1392 = vmatprep.subr.bf16.mxu0 0
  %1393 = vmatpush1.bf16.xpose.msra.mxu0 0
  %1394 = vmatprep.subr.bf16.mxu0 0
  %1395 = vmatpush1.bf16.xpose.msra.mxu0 0
  %1396 = vmatprep.subr.bf16.mxu0 0
  %1397 = vmatpush1.bf16.xpose.msra.mxu0 0
  %1398 = vmatprep.subr.bf16.mxu0 0
  %1399 = vmatpush1.bf16.xpose.msra.mxu0 0
  %1400 = vmatprep.mubr.bf16.mxu0 0
  %1401 = vmatmul.mubr.bf16.gmra.mrb[0].mxu0 %v1354
  %v1402 = vpop.f32.mrb[0].mxu0
  %v1403 = vadd.f32 %v35, %v1402
  %v1404 = vpop.f32.mrb[0].mxu0
  %v1405 = vpop.f32.mrb[0].mxu0
  %v1406 = vadd.f32 %v36, %v1405
  %v1407 = vpop.f32.mrb[0].mxu0
  %1408 = vmatprep.mubr.bf16.mxu0 0
  %1409 = vmatmul.mubr.bf16.gmra.mrb[0].mxu0 %v1357
  %v1410 = vpop.f32.mrb[0].mxu0
  %v1411 = vadd.f32 %v37, %v1410
  %v1412 = vpop.f32.mrb[0].mxu0
  %v1413 = vpop.f32.mrb[0].mxu0
  %v1414 = vadd.f32 %v38, %v1413
  %v1415 = vpop.f32.mrb[0].mxu0
  %1416 = vmatprep.mubr.bf16.mxu0 0
  %1417 = vmatmul.mubr.bf16.gmra.mrb[0].mxu0 %v1360
  %v1418 = vpop.f32.mrb[0].mxu0
  %v1419 = vadd.f32 %v39, %v1418
  %v1420 = vpop.f32.mrb[0].mxu0
  %v1421 = vpop.f32.mrb[0].mxu0
  %v1422 = vadd.f32 %v40, %v1421
  %v1423 = vpop.f32.mrb[0].mxu0
  %1424 = vmatprep.mubr.bf16.mxu0 0
  %1425 = vmatmul.mubr.bf16.gmra.mrb[0].mxu0 %v1363
  %v1426 = vpop.f32.mrb[0].mxu0
  %v1427 = vadd.f32 %v41, %v1426
  %v1428 = vpop.f32.mrb[0].mxu0
  %v1429 = vpop.f32.mrb[0].mxu0
  %v1430 = vadd.f32 %v42, %v1429
  %v1431 = vpop.f32.mrb[0].mxu0
  %1432 = vdwg.mxu0
  %v1433 = vsel %vm580, %v1403, -inf
  %1434 = vmax.xlane.f32.xlu0 %v1433
  %v1435 = vpop.xlane.xlu0 %1434
  %v1436 = vsel %vm580, %v1406, -inf
  %1437 = vmax.xlane.f32.xlu0 %v1436
  %v1438 = vpop.xlane.xlu0 %1437
  %v1439 = vsel %vm580, %v1411, -inf
  %1440 = vmax.xlane.f32.xlu0 %v1439
  %v1441 = vpop.xlane.xlu0 %1440
  %v1442 = vsel %vm580, %v1414, -inf
  %1443 = vmax.xlane.f32.xlu0 %v1442
  %v1444 = vpop.xlane.xlu0 %1443
  %v1445 = vsel %vm580, %v1419, -inf
  %1446 = vmax.xlane.f32.xlu0 %v1445
  %v1447 = vpop.xlane.xlu0 %1446
  %v1448 = vsel %vm580, %v1422, -inf
  %1449 = vmax.xlane.f32.xlu0 %v1448
  %v1450 = vpop.xlane.xlu0 %1449
  %v1451 = vsel %vm580, %v1427, -inf
  %1452 = vmax.xlane.f32.xlu0 %v1451
  %v1453 = vpop.xlane.xlu0 %1452
  %v1454 = vsel %vm580, %v1430, -inf
  %1455 = vmax.xlane.f32.xlu0 %v1454
  %v1456 = vpop.xlane.xlu0 %1455
  %v1457 = vsub.f32 %v1403, %v1435
  %v1458 = vsub.f32 %v1406, %v1438
  %v1459 = vsub.f32 %v1411, %v1441
  %v1460 = vsub.f32 %v1414, %v1444
  %v1461 = vsub.f32 %v1419, %v1447
  %v1462 = vsub.f32 %v1422, %v1450
  %v1463 = vsub.f32 %v1427, %v1453
  %v1464 = vsub.f32 %v1430, %v1456
  %v1465 = vmul.f32 %v1457, 1.442695
  %v1466 = vpow.pop %v1465
  %v1467 = vmul.f32 %v1458, 1.442695
  %v1468 = vpow.pop %v1467
  %v1469 = vmul.f32 %v1459, 1.442695
  %v1470 = vpow.pop %v1469
  %v1471 = vmul.f32 %v1460, 1.442695
  %v1472 = vpow.pop %v1471
  %v1473 = vmul.f32 %v1461, 1.442695
  %v1474 = vpow.pop %v1473
  %v1475 = vmul.f32 %v1462, 1.442695
  %v1476 = vpow.pop %v1475
  %v1477 = vmul.f32 %v1463, 1.442695
  %v1478 = vpow.pop %v1477
  %v1479 = vmul.f32 %v1464, 1.442695
  %v1480 = vpow.pop %v1479
  %v1481 = vsel %vm580, %v1466, 0.0
  %1482 = vadd.xlane.f32.xlu0 %v1481
  %v1483 = vpop.xlane.xlu0 %1482
  %v1484 = vsel %vm580, %v1468, 0.0
  %1485 = vadd.xlane.f32.xlu0 %v1484
  %v1486 = vpop.xlane.xlu0 %1485
  %v1487 = vsel %vm580, %v1470, 0.0
  %1488 = vadd.xlane.f32.xlu0 %v1487
  %v1489 = vpop.xlane.xlu0 %1488
  %v1490 = vsel %vm580, %v1472, 0.0
  %1491 = vadd.xlane.f32.xlu0 %v1490
  %v1492 = vpop.xlane.xlu0 %1491
  %v1493 = vsel %vm580, %v1474, 0.0
  %1494 = vadd.xlane.f32.xlu0 %v1493
  %v1495 = vpop.xlane.xlu0 %1494
  %v1496 = vsel %vm580, %v1476, 0.0
  %1497 = vadd.xlane.f32.xlu0 %v1496
  %v1498 = vpop.xlane.xlu0 %1497
  %v1499 = vsel %vm580, %v1478, 0.0
  %1500 = vadd.xlane.f32.xlu0 %v1499
  %v1501 = vpop.xlane.xlu0 %1500
  %v1502 = vsel %vm580, %v1480, 0.0
  %1503 = vadd.xlane.f32.xlu0 %v1502
  %v1504 = vpop.xlane.xlu0 %1503
  %v1505 = vrcp.pop %v1483
  %v1506 = vrcp.pop %v1486
  %v1507 = vrcp.pop %v1489
  %v1508 = vrcp.pop %v1492
  %v1509 = vrcp.pop %v1495
  %v1510 = vrcp.pop %v1498
  %v1511 = vrcp.pop %v1501
  %v1512 = vrcp.pop %v1504
  %v1513 = vmul.f32 %v1466, %v1505
  %v1514 = vmul.f32 %v1468, %v1506
  %v1515 = vmul.f32 %v1470, %v1507
  %v1516 = vmul.f32 %v1472, %v1508
  %v1517 = vmul.f32 %v1474, %v1509
  %v1518 = vmul.f32 %v1476, %v1510
  %v1519 = vmul.f32 %v1478, %v1511
  %v1520 = vmul.f32 %v1480, %v1512
  %v1521 = vpack.c.bf16 %v1514, %v1513
  %v1522 = vpack.c.bf16 %v1516, %v1515
  %v1523 = vpack.c.bf16 %v1518, %v1517
  %v1524 = vpack.c.bf16 %v1520, %v1519
  %v1525 = vpack.c.bf16 %v1337, %v1334
  %v1527 = vsel %vm580, %v1521, 0
  %v1530 = vsel %vm580, %v1522, 0
  %v1533 = vsel %vm580, %v1523, 0
  %v1536 = vsel %vm580, %v1524, 0
  %1538 = vmatprep.subr.bf16.mxu0 0
  %1539 = vmatpush1.bf16.msra.mxu0 %v1525
  %1540 = vmatprep.subr.bf16.mxu0 0
  %1541 = vmatpush1.bf16.msra.mxu0 0
  %1542 = vmatprep.subr.bf16.mxu0 0
  %1543 = vmatpush1.bf16.msra.mxu0 0
  %1544 = vmatprep.subr.bf16.mxu0 0
  %1545 = vmatpush1.bf16.msra.mxu0 0
  %1546 = vmatprep.subr.bf16.mxu0 0
  %1547 = vmatpush1.bf16.msra.mxu0 0
  %1548 = vmatprep.subr.bf16.mxu0 0
  %1549 = vmatpush1.bf16.msra.mxu0 0
  %1550 = vmatprep.subr.bf16.mxu0 0
  %1551 = vmatpush1.bf16.msra.mxu0 0
  %1552 = vmatprep.subr.bf16.mxu0 0
  %1553 = vmatpush1.bf16.msra.mxu0 0
  %1554 = vmatprep.subr.bf16.mxu0 0
  %1555 = vmatpush1.bf16.msra.mxu0 0
  %1556 = vmatprep.subr.bf16.mxu0 0
  %1557 = vmatpush1.bf16.msra.mxu0 0
  %1558 = vmatprep.subr.bf16.mxu0 0
  %1559 = vmatpush1.bf16.msra.mxu0 0
  %1560 = vmatprep.subr.bf16.mxu0 0
  %1561 = vmatpush1.bf16.msra.mxu0 0
  %1562 = vmatprep.subr.bf16.mxu0 0
  %1563 = vmatpush1.bf16.msra.mxu0 0
  %1564 = vmatprep.subr.bf16.mxu0 0
  %1565 = vmatpush1.bf16.msra.mxu0 0
  %1566 = vmatprep.subr.bf16.mxu0 0
  %1567 = vmatpush1.bf16.msra.mxu0 0
  %1568 = vmatprep.subr.bf16.mxu0 0
  %1569 = vmatpush1.bf16.msra.mxu0 0
  %1570 = vmatprep.mubr.bf16.mxu0 0
  %1571 = vmatmul.mubr.bf16.gmra.mrb[0].mxu0 %v1527
  %v1572 = vpop.f32.mrb[0].mxu0
  %v1573 = vadd.f32 0.0, %v1572
  %v1574 = vpop.f32.mrb[0].mxu0
  %v1575 = vpop.f32.mrb[0].mxu0
  %v1576 = vadd.f32 0.0, %v1575
  %v1577 = vpop.f32.mrb[0].mxu0
  %1578 = vmatprep.mubr.bf16.mxu0 0
  %1579 = vmatmul.mubr.bf16.gmra.mrb[0].mxu0 %v1530
  %v1580 = vpop.f32.mrb[0].mxu0
  %v1581 = vadd.f32 0.0, %v1580
  %v1582 = vpop.f32.mrb[0].mxu0
  %v1583 = vpop.f32.mrb[0].mxu0
  %v1584 = vadd.f32 0.0, %v1583
  %v1585 = vpop.f32.mrb[0].mxu0
  %1586 = vmatprep.mubr.bf16.mxu0 0
  %1587 = vmatmul.mubr.bf16.gmra.mrb[0].mxu0 %v1533
  %v1588 = vpop.f32.mrb[0].mxu0
  %v1589 = vadd.f32 0.0, %v1588
  %v1590 = vpop.f32.mrb[0].mxu0
  %v1591 = vpop.f32.mrb[0].mxu0
  %v1592 = vadd.f32 0.0, %v1591
  %v1593 = vpop.f32.mrb[0].mxu0
  %1594 = vmatprep.mubr.bf16.mxu0 0
  %1595 = vmatmul.mubr.bf16.gmra.mrb[0].mxu0 %v1536
  %v1596 = vpop.f32.mrb[0].mxu0
  %v1597 = vadd.f32 0.0, %v1596
  %v1598 = vpop.f32.mrb[0].mxu0
  %v1599 = vpop.f32.mrb[0].mxu0
  %v1600 = vadd.f32 0.0, %v1599
  %v1601 = vpop.f32.mrb[0].mxu0
  %1602 = vdwg.mxu0
  %v1603 = vmul.f32 %v1573, %v27
  %v1604 = vmul.f32 %v1576, %v28
  %v1605 = vmul.f32 %v1581, %v29
  %v1606 = vmul.f32 %v1584, %v30
  %v1607 = vmul.f32 %v1589, %v31
  %v1608 = vmul.f32 %v1592, %v32
  %v1609 = vmul.f32 %v1597, %v33
  %v1610 = vmul.f32 %v1600, %v34
  %v1611 = vadd.f32 %v1603, %v1605
  %v1612 = vadd.f32 %v1604, %v1606
  %v1613 = vadd.f32 %v1611, %v1607
  %v1614 = vadd.f32 %v1612, %v1608
  %v1615 = vadd.f32 %v1613, %v1609
  %v1616 = vadd.f32 %v1614, %v1610
  %v1617 = vpack.c.bf16 %v1616, %v1615
  %v1622 = vunpack.c.l.b16 %v1093
  %v1623 = vunpack.c.l.b16 %v1094
  %v1624 = vunpack.c.l.b16 %v1095
  %v1625 = vunpack.c.l.b16 %v1096
  %v1626 = vpack.c.b16 %v1623, %v1622
  %v1627 = vpack.c.b16 %v1625, %v1624
  %v1631 = vsel %vm272, %v1617, 0
  %1633 = vmatprep.subr.bf16.mxu0 0
  %1634 = vmatpush1.bf16.msra.mxu0 %v1626
  %1635 = vmatprep.subr.bf16.mxu0 0
  %1636 = vmatpush1.bf16.msra.mxu0 %v1627
  %1637 = vmatprep.subr.bf16.mxu0 0
  %1638 = vmatpush1.bf16.msra.mxu0 0
  %1639 = vmatprep.subr.bf16.mxu0 0
  %1640 = vmatpush1.bf16.msra.mxu0 0
  %1641 = vmatprep.subr.bf16.mxu0 0
  %1642 = vmatpush1.bf16.msra.mxu0 0
  %1643 = vmatprep.subr.bf16.mxu0 0
  %1644 = vmatpush1.bf16.msra.mxu0 0
  %1645 = vmatprep.subr.bf16.mxu0 0
  %1646 = vmatpush1.bf16.msra.mxu0 0
  %1647 = vmatprep.subr.bf16.mxu0 0
  %1648 = vmatpush1.bf16.msra.mxu0 0
  %1649 = vmatprep.subr.bf16.mxu0 0
  %1650 = vmatpush1.bf16.msra.mxu0 0
  %1651 = vmatprep.subr.bf16.mxu0 0
  %1652 = vmatpush1.bf16.msra.mxu0 0
  %1653 = vmatprep.subr.bf16.mxu0 0
  %1654 = vmatpush1.bf16.msra.mxu0 0
  %1655 = vmatprep.subr.bf16.mxu0 0
  %1656 = vmatpush1.bf16.msra.mxu0 0
  %1657 = vmatprep.subr.bf16.mxu0 0
  %1658 = vmatpush1.bf16.msra.mxu0 0
  %1659 = vmatprep.subr.bf16.mxu0 0
  %1660 = vmatpush1.bf16.msra.mxu0 0
  %1661 = vmatprep.subr.bf16.mxu0 0
  %1662 = vmatpush1.bf16.msra.mxu0 0
  %1663 = vmatprep.subr.bf16.mxu0 0
  %1664 = vmatpush1.bf16.msra.mxu0 0
  %1665 = vmatprep.mubr.bf16.mxu0 0
  %1666 = vmatmul.mubr.bf16.gmra.mrb[0].mxu0 %v1631
  %v1667 = vpop.f32.mrb[0].mxu0
  %v1668 = vadd.f32 0.0, %v1667
  %v1669 = vpop.f32.mrb[0].mxu0
  %v1670 = vpop.f32.mrb[0].mxu0
  %v1671 = vadd.f32 0.0, %v1670
  %v1672 = vpop.f32.mrb[0].mxu0
  %1673 = vdwg.mxu0
  %v1674 = vadd.f32 %v1079, %v1668
  %v1675 = vadd.f32 %v1080, %v1671
  %v1676 = vlaneseq
  %v1677 = vshrl.u32 %v1676, 7
  %v1678 = vsub.s32 0, %v1677
  %v1679 = vrot.slane %v1122, %v1678
  %v1680 = vadd.f32 %v1674, %v1679
  %v1681 = vadd.f32 %v1675, %v1679
  %v1682 = vsel %vm272, %v1680, 0.0
  %1683 = vadd.xlane.f32.xlu0 %v1682
  %v1684 = vpop.xlane.xlu0 %1683
  %v1685 = vsel %vm272, %v1681, 0.0
  %1686 = vadd.xlane.f32.xlu0 %v1685
  %v1687 = vpop.xlane.xlu0 %1686
  %v1688 = vmul.f32 %v1684, %v279
  %v1689 = vmul.f32 %v1687, %v279
  %v1690 = vsub.f32 %v1680, %v1688
  %v1691 = vsub.f32 %v1681, %v1689
  %v1692 = vmul.f32 %v1690, %v1690
  %v1693 = vmul.f32 %v1691, %v1691
  %v1694 = vsel %vm272, %v1692, 0.0
  %1695 = vadd.xlane.f32.xlu0 %v1694
  %v1696 = vpop.xlane.xlu0 %1695
  %v1697 = vsel %vm272, %v1693, 0.0
  %1698 = vadd.xlane.f32.xlu0 %v1697
  %v1699 = vpop.xlane.xlu0 %1698
  %v1700 = vmul.f32 %v1696, %v279
  %v1701 = vmul.f32 %v1699, %v279
  %v1702 = vadd.f32 %v1700, 1e-06
  %v1703 = vadd.f32 %v1701, 1e-06
  %v1704 = vrsqrt.pop %v1702
  %v1705 = vrsqrt.pop %v1703
  %v1706 = vmul.f32 %v1690, %v1704
  %v1707 = vmul.f32 %v1691, %v1705
  %v1708 = vlaneseq
  %v1709 = vshrl.u32 %v1708, 7
  %v1710 = vsub.s32 0, %v1709
  %v1711 = vrot.slane %v1123, %v1710
  %v1712 = vmul.f32 %v1706, %v1711
  %v1713 = vmul.f32 %v1707, %v1711
  %v1714 = vlaneseq
  %v1715 = vshrl.u32 %v1714, 7
  %v1716 = vsub.s32 0, %v1715
  %v1717 = vrot.slane %v1124, %v1716
  %v1718 = vadd.f32 %v1712, %v1717
  %v1719 = vadd.f32 %v1713, %v1717
  %v1720 = vpack.c.bf16 %v1719, %v1718
  %v1721 = vlaneseq
  %v1722 = vshrl.u32 %v1721, 7
  %v1723 = vsub.s32 0, %v1722
  %v1724 = vrot.slane %v1125, %v1723
  %v1729 = vunpack.c.l.b16 %v1113
  %v1730 = vunpack.c.l.b16 %v1114
  %v1731 = vunpack.c.l.b16 %v1115
  %v1732 = vunpack.c.l.b16 %v1116
  %v1733 = vpack.c.b16 %v1730, %v1729
  %v1734 = vpack.c.b16 %v1732, %v1731
  %v1738 = vsel %vm272, %v1720, 0
  %1740 = vmatprep.subr.bf16.mxu0 0
  %1741 = vmatpush1.bf16.msra.mxu0 %v1733
  %1742 = vmatprep.subr.bf16.mxu0 0
  %1743 = vmatpush1.bf16.msra.mxu0 %v1734
  %1744 = vmatprep.subr.bf16.mxu0 0
  %1745 = vmatpush1.bf16.msra.mxu0 0
  %1746 = vmatprep.subr.bf16.mxu0 0
  %1747 = vmatpush1.bf16.msra.mxu0 0
  %1748 = vmatprep.subr.bf16.mxu0 0
  %1749 = vmatpush1.bf16.msra.mxu0 0
  %1750 = vmatprep.subr.bf16.mxu0 0
  %1751 = vmatpush1.bf16.msra.mxu0 0
  %1752 = vmatprep.subr.bf16.mxu0 0
  %1753 = vmatpush1.bf16.msra.mxu0 0
  %1754 = vmatprep.subr.bf16.mxu0 0
  %1755 = vmatpush1.bf16.msra.mxu0 0
  %1756 = vmatprep.subr.bf16.mxu0 0
  %1757 = vmatpush1.bf16.msra.mxu0 0
  %1758 = vmatprep.subr.bf16.mxu0 0
  %1759 = vmatpush1.bf16.msra.mxu0 0
  %1760 = vmatprep.subr.bf16.mxu0 0
  %1761 = vmatpush1.bf16.msra.mxu0 0
  %1762 = vmatprep.subr.bf16.mxu0 0
  %1763 = vmatpush1.bf16.msra.mxu0 0
  %1764 = vmatprep.subr.bf16.mxu0 0
  %1765 = vmatpush1.bf16.msra.mxu0 0
  %1766 = vmatprep.subr.bf16.mxu0 0
  %1767 = vmatpush1.bf16.msra.mxu0 0
  %1768 = vmatprep.subr.bf16.mxu0 0
  %1769 = vmatpush1.bf16.msra.mxu0 0
  %1770 = vmatprep.subr.bf16.mxu0 0
  %1771 = vmatpush1.bf16.msra.mxu0 0
  %1772 = vmatprep.mubr.bf16.mxu0 0
  %1773 = vmatmul.mubr.bf16.gmra.mrb[0].mxu0 %v1738
  %v1774 = vpop.f32.mrb[0].mxu0
  %v1775 = vadd.f32 %v1724, %v1774
  %v1776 = vpop.f32.mrb[0].mxu0
  %v1777 = vpop.f32.mrb[0].mxu0
  %v1778 = vadd.f32 %v1724, %v1777
  %v1779 = vpop.f32.mrb[0].mxu0
  %1780 = vdwg.mxu0
  %v1781 = vmul.f32 %v1775, 0.5
  %v1782 = vmul.f32 %v1778, 0.5
  %v1783 = vmul.f32 %v1775, 0.70710677
  %v1784 = vmul.f32 %v1778, 0.70710677
  %vm1785 = vcmp.ge.f32.partialorder %v1783, 0.0
  %vm1786 = vcmp.ge.f32.partialorder %v1784, 0.0
  %v1787 = vsel %vm1785, 1.0, -1.0
  %v1788 = vsel %vm1786, 1.0, -1.0
  %v1789 = vand.u32 2147483647, %v1783
  %v1790 = vand.u32 2147483647, %v1784
  %v1791 = vmul.f32 %v1789, 0.3275911
  %v1792 = vmul.f32 %v1790, 0.3275911
  %v1793 = vadd.f32 %v1791, 1.0
  %v1794 = vadd.f32 %v1792, 1.0
  %v1795 = vrcp.pop %v1793
  %v1796 = vmul.f32 1.0, %v1795
  %v1797 = vrcp.pop %v1794
  %v1798 = vmul.f32 1.0, %v1797
  %v1799 = vmul.f32 %v1796, 1.0614054
  %v1800 = vmul.f32 %v1798, 1.0614054
  %v1801 = vadd.f32 %v1799, -1.4531521
  %v1802 = vadd.f32 %v1800, -1.4531521
  %v1803 = vmul.f32 %v1801, %v1796
  %v1804 = vmul.f32 %v1802, %v1798
  %v1805 = vadd.f32 %v1803, 1.4214138
  %v1806 = vadd.f32 %v1804, 1.4214138
  %v1807 = vmul.f32 %v1805, %v1796
  %v1808 = vmul.f32 %v1806, %v1798
  %v1809 = vadd.f32 %v1807, -0.28449672
  %v1810 = vadd.f32 %v1808, -0.28449672
  %v1811 = vmul.f32 %v1809, %v1796
  %v1812 = vmul.f32 %v1810, %v1798
  %v1813 = vadd.f32 %v1811, 0.2548296
  %v1814 = vadd.f32 %v1812, 0.2548296
  %v1815 = vmul.f32 %v1813, %v1796
  %v1816 = vmul.f32 %v1814, %v1798
  %v1817 = vsub.f32 0.0, %v1789
  %v1818 = vsub.f32 0.0, %v1790
  %v1819 = vmul.f32 %v1817, %v1789
  %v1820 = vmul.f32 %v1818, %v1790
  %v1821 = vmul.f32 %v1819, 1.442695
  %v1822 = vpow.pop %v1821
  %v1823 = vmul.f32 %v1820, 1.442695
  %v1824 = vpow.pop %v1823
  %v1825 = vmul.f32 %v1815, %v1822
  %v1826 = vmul.f32 %v1816, %v1824
  %v1827 = vsub.f32 1.0, %v1825
  %v1828 = vsub.f32 1.0, %v1826
  %v1829 = vmul.f32 %v1787, %v1827
  %v1830 = vmul.f32 %v1788, %v1828
  %v1831 = vadd.f32 %v1829, 1.0
  %v1832 = vadd.f32 %v1830, 1.0
  %v1833 = vmul.f32 %v1781, %v1831
  %v1834 = vmul.f32 %v1782, %v1832
  %v1835 = vpack.c.bf16 %v1834, %v1833
  %v1852 = vunpack.c.l.b16 %v1097
  %v1853 = vunpack.c.l.b16 %v1098
  %v1854 = vunpack.c.l.b16 %v1099
  %v1855 = vunpack.c.l.b16 %v1100
  %v1856 = vunpack.c.l.b16 %v1101
  %v1857 = vunpack.c.l.b16 %v1102
  %v1858 = vunpack.c.l.b16 %v1103
  %v1859 = vunpack.c.l.b16 %v1104
  %v1860 = vunpack.c.l.b16 %v1105
  %v1861 = vunpack.c.l.b16 %v1106
  %v1862 = vunpack.c.l.b16 %v1107
  %v1863 = vunpack.c.l.b16 %v1108
  %v1864 = vunpack.c.l.b16 %v1109
  %v1865 = vunpack.c.l.b16 %v1110
  %v1866 = vunpack.c.l.b16 %v1111
  %v1867 = vunpack.c.l.b16 %v1112
  %v1868 = vpack.c.b16 %v1853, %v1852
  %v1869 = vpack.c.b16 %v1855, %v1854
  %v1870 = vpack.c.b16 %v1857, %v1856
  %v1871 = vpack.c.b16 %v1859, %v1858
  %v1872 = vpack.c.b16 %v1861, %v1860
  %v1873 = vpack.c.b16 %v1863, %v1862
  %v1874 = vpack.c.b16 %v1865, %v1864
  %v1875 = vpack.c.b16 %v1867, %v1866
  %1884 = vmatprep.subr.bf16.mxu0 0
  %1885 = vmatpush1.bf16.msra.mxu0 %v1868
  %1886 = vmatprep.subr.bf16.mxu0 0
  %1887 = vmatpush1.bf16.msra.mxu0 %v1869
  %1888 = vmatprep.subr.bf16.mxu0 0
  %1889 = vmatpush1.bf16.msra.mxu0 %v1870
  %1890 = vmatprep.subr.bf16.mxu0 0
  %1891 = vmatpush1.bf16.msra.mxu0 %v1871
  %1892 = vmatprep.subr.bf16.mxu0 0
  %1893 = vmatpush1.bf16.msra.mxu0 %v1872
  %1894 = vmatprep.subr.bf16.mxu0 0
  %1895 = vmatpush1.bf16.msra.mxu0 %v1873
  %1896 = vmatprep.subr.bf16.mxu0 0
  %1897 = vmatpush1.bf16.msra.mxu0 %v1874
  %1898 = vmatprep.subr.bf16.mxu0 0
  %1899 = vmatpush1.bf16.msra.mxu0 %v1875
  %1900 = vmatprep.subr.bf16.mxu0 0
  %1901 = vmatpush1.bf16.msra.mxu0 0
  %1902 = vmatprep.subr.bf16.mxu0 0
  %1903 = vmatpush1.bf16.msra.mxu0 0
  %1904 = vmatprep.subr.bf16.mxu0 0
  %1905 = vmatpush1.bf16.msra.mxu0 0
  %1906 = vmatprep.subr.bf16.mxu0 0
  %1907 = vmatpush1.bf16.msra.mxu0 0
  %1908 = vmatprep.subr.bf16.mxu0 0
  %1909 = vmatpush1.bf16.msra.mxu0 0
  %1910 = vmatprep.subr.bf16.mxu0 0
  %1911 = vmatpush1.bf16.msra.mxu0 0
  %1912 = vmatprep.subr.bf16.mxu0 0
  %1913 = vmatpush1.bf16.msra.mxu0 0
  %1914 = vmatprep.subr.bf16.mxu0 0
  %1915 = vmatpush1.bf16.msra.mxu0 0
  %1916 = vmatprep.mubr.bf16.mxu0 0
  %1917 = vmatmul.mubr.bf16.gmra.mrb[0].mxu0 %v1835
  %v1918 = vpop.f32.mrb[0].mxu0
  %v1919 = vadd.f32 0.0, %v1918
  %v1920 = vpop.f32.mrb[0].mxu0
  %v1921 = vpop.f32.mrb[0].mxu0
  %v1922 = vadd.f32 0.0, %v1921
  %v1923 = vpop.f32.mrb[0].mxu0
  %1924 = vdwg.mxu0
  %v1925 = vadd.f32 %v1680, %v1919
  %v1926 = vadd.f32 %v1681, %v1922
  %v1927 = vlaneseq
  %v1928 = vshrl.u32 %v1927, 7
  %v1929 = vsub.s32 0, %v1928
  %v1930 = vrot.slane %v1126, %v1929
  %v1931 = vadd.f32 %v1925, %v1930
  %v1932 = vadd.f32 %v1926, %v1930
  %v1933 = vld [vmem:[%s6 + $0x14] sm:$0x1]
  %v1934 = vld [vmem:[%s6 + $0x15] sm:$0x1]
  %v1935 = vsel %vm272, %v1931, 0.0
  %1936 = vadd.xlane.f32.xlu0 %v1935
  %v1937 = vpop.xlane.xlu0 %1936
  %v1938 = vsel %vm272, %v1932, 0.0
  %1939 = vadd.xlane.f32.xlu0 %v1938
  %v1940 = vpop.xlane.xlu0 %1939
  %v1941 = vmul.f32 %v1937, %v279
  %v1942 = vmul.f32 %v1940, %v279
  %v1943 = vsub.f32 %v1931, %v1941
  %v1944 = vsub.f32 %v1932, %v1942
  %v1945 = vmul.f32 %v1943, %v1943
  %v1946 = vmul.f32 %v1944, %v1944
  %v1947 = vsel %vm272, %v1945, 0.0
  %1948 = vadd.xlane.f32.xlu0 %v1947
  %v1949 = vpop.xlane.xlu0 %1948
  %v1950 = vsel %vm272, %v1946, 0.0
  %1951 = vadd.xlane.f32.xlu0 %v1950
  %v1952 = vpop.xlane.xlu0 %1951
  %v1953 = vmul.f32 %v1949, %v279
  %v1954 = vmul.f32 %v1952, %v279
  %v1955 = vadd.f32 %v1953, 1e-06
  %v1956 = vadd.f32 %v1954, 1e-06
  %v1957 = vrsqrt.pop %v1955
  %v1958 = vrsqrt.pop %v1956
  %v1959 = vmul.f32 %v1943, %v1957
  %v1960 = vmul.f32 %v1944, %v1958
  %v1961 = vlaneseq
  %v1962 = vshrl.u32 %v1961, 7
  %v1963 = vsub.s32 0, %v1962
  %v1964 = vrot.slane %v1933, %v1963
  %v1965 = vmul.f32 %v1959, %v1964
  %v1966 = vmul.f32 %v1960, %v1964
  %v1967 = vlaneseq
  %v1968 = vshrl.u32 %v1967, 7
  %v1969 = vsub.s32 0, %v1968
  %v1970 = vrot.slane %v1934, %v1969
  %v1971 = vadd.f32 %v1965, %v1970
  %v1972 = vadd.f32 %v1966, %v1970
  %v1973 = vpack.c.bf16 %v1972, %v1971
  %v1974 = vld [vmem:[%s5 + $0x20] sm:$0xf]
  %v1975 = vld [vmem:[%s5 + $0x24] sm:$0xf]
  %v1976 = vld [vmem:[%s5 + $0x28] sm:$0xf]
  %v1977 = vld [vmem:[%s5 + $0x2c] sm:$0xf]
  %v1978 = vld [vmem:[%s6 + $0x16] sm:$0x1]
  %v1979 = vlaneseq
  %v1980 = vshrl.u32 %v1979, 7
  %v1981 = vsub.s32 0, %v1980
  %v1982 = vrot.slane %v1978, %v1981
  %v1987 = vunpack.c.l.b16 %v1974
  %v1988 = vunpack.c.l.b16 %v1975
  %v1989 = vunpack.c.l.b16 %v1976
  %v1990 = vunpack.c.l.b16 %v1977
  %v1991 = vpack.c.b16 %v1988, %v1987
  %v1992 = vpack.c.b16 %v1990, %v1989
  %v1996 = vsel %vm272, %v1973, 0
  %1998 = vmatprep.subr.bf16.mxu0 0
  %1999 = vmatpush1.bf16.msra.mxu0 %v1991
  %2000 = vmatprep.subr.bf16.mxu0 0
  %2001 = vmatpush1.bf16.msra.mxu0 %v1992
  %2002 = vmatprep.subr.bf16.mxu0 0
  %2003 = vmatpush1.bf16.msra.mxu0 0
  %2004 = vmatprep.subr.bf16.mxu0 0
  %2005 = vmatpush1.bf16.msra.mxu0 0
  %2006 = vmatprep.subr.bf16.mxu0 0
  %2007 = vmatpush1.bf16.msra.mxu0 0
  %2008 = vmatprep.subr.bf16.mxu0 0
  %2009 = vmatpush1.bf16.msra.mxu0 0
  %2010 = vmatprep.subr.bf16.mxu0 0
  %2011 = vmatpush1.bf16.msra.mxu0 0
  %2012 = vmatprep.subr.bf16.mxu0 0
  %2013 = vmatpush1.bf16.msra.mxu0 0
  %2014 = vmatprep.subr.bf16.mxu0 0
  %2015 = vmatpush1.bf16.msra.mxu0 0
  %2016 = vmatprep.subr.bf16.mxu0 0
  %2017 = vmatpush1.bf16.msra.mxu0 0
  %2018 = vmatprep.subr.bf16.mxu0 0
  %2019 = vmatpush1.bf16.msra.mxu0 0
  %2020 = vmatprep.subr.bf16.mxu0 0
  %2021 = vmatpush1.bf16.msra.mxu0 0
  %2022 = vmatprep.subr.bf16.mxu0 0
  %2023 = vmatpush1.bf16.msra.mxu0 0
  %2024 = vmatprep.subr.bf16.mxu0 0
  %2025 = vmatpush1.bf16.msra.mxu0 0
  %2026 = vmatprep.subr.bf16.mxu0 0
  %2027 = vmatpush1.bf16.msra.mxu0 0
  %2028 = vmatprep.subr.bf16.mxu0 0
  %2029 = vmatpush1.bf16.msra.mxu0 0
  %2030 = vmatprep.mubr.bf16.mxu0 0
  %2031 = vmatmul.mubr.bf16.gmra.mrb[0].mxu0 %v1996
  %v2032 = vpop.f32.mrb[0].mxu0
  %v2033 = vadd.f32 %v1982, %v2032
  %v2034 = vpop.f32.mrb[0].mxu0
  %v2035 = vpop.f32.mrb[0].mxu0
  %v2036 = vadd.f32 %v1982, %v2035
  %v2037 = vpop.f32.mrb[0].mxu0
  %2038 = vdwg.mxu0
  %2039 = vst [vmem:[%s7] sm:$0xff] %v2033
  %2040 = vst [vmem:[%s7 + $0x8] sm:$0xff] %v2036
  // Predicated region
  $region30: #{vit_forward.1} parent=0 // pred_check
    _
  $region31: #{vit_forward.1} parent=0 // pred_check_branch
    %2042 = sbr.rel (0) target = $region33
  $region32: #{vit_forward.1} parent=0 // pred_region
    _
  $region33: #{vit_forward.1} parent=0 // pred_fallthru
    _
  // Predicated region
  $region34: #{vit_forward.1} parent=0 // pred_check
    _
  $region35: #{vit_forward.1} parent=0 // pred_check_branch
    %2044 = sbr.rel (0) target = $region37
  $region36: #{vit_forward.1} parent=0 // pred_region
    _
  $region37: #{vit_forward.1} parent=0 // pred_fallthru
    _

</llo_original>
